<compile_context>
chip_gen: v5e
topology: v5e:2x2
jax: 0.10.0
libtpu: 0.0.40
codegen_flags: <defaults>
</compile_context>

<pallas_src>
import functools

import jax
import jax.numpy as jnp
import numpy as np
from jax.experimental import pallas as pl
from jax.experimental.pallas import tpu as pltpu

_LANE = 128


def _round_up(x, m):
    return ((x + m - 1) // m) * m


def _vmem_capacity_bytes():
    try:
        info = pltpu.get_tpu_info()
        cap = getattr(info, "vmem_capacity_bytes", None)
        if cap:
            return int(cap)
    except Exception:
        pass
    return 128 << 20          # v5e/v6e physical VMEM; conservative fallback


# ---------------------------------------------------------------------------
# Fused kernel: Chebyshev recurrence (MXU) + single combine pass fused with
# max-pool + brelu + FC head, one batch-lane tile per grid step.
# ---------------------------------------------------------------------------
def _fused_gc_fc_kernel(l_ref, xt_ref, w_ref, b_ref, fcwt_ref, fcb_ref, o_ref,
                        *, poly_degree, pooling_size, n_pool, use_bf16):
    """Shapes (Np = padded node count, TB = batch tile in the lane axis):
      l_ref    : (Np, Np)   rescaled Laplacian, zero-padded (bf16 if use_bf16)
      xt_ref   : (Np, TB)   graph signal, batch in lanes (= T_0)
      w_ref    : (OUT, K)   GC filter weights, W[o, k]
      b_ref    : (OUT, 1)   GC bias
      fcwt_ref : (C, FLAT)  FC weight^T (column order matches the combine path below)
      fcb_ref  : (C, 1)     FC bias
      o_ref    : (C, TB)    logits^T (batch in lanes)
    """
    K = poly_degree
    P = pooling_size
    OUT = w_ref.shape[0]
    TB = xt_ref.shape[1]
    C = o_ref.shape[0]

    l = l_ref[...]

    def lmul(t):                       # (Np,Np) @ (Np,TB) on the MXU, f32 accumulation
        t_mm = t.astype(l.dtype) if use_bf16 else t
        return jnp.dot(l, t_mm, preferred_element_type=jnp.float32)

    # Chebyshev basis T_0..T_{K-1}: only K tiles of (Np, TB); recurrence carry stays f32.
    t_list = [xt_ref[...]]
    if K > 1:
        t_list.append(lmul(t_list[0]))
        for _ in range(2, K):
            t_list.append(2.0 * lmul(t_list[-1]) - t_list[-2])

    w = w_ref[...]                                            # (OUT, K)
    bias_b = jnp.broadcast_to(b_ref[...], (OUT, TB))          # hoisted: one broadcast
    logits = jnp.broadcast_to(fcb_ref[...], (C, TB))          # FC bias seeds the acc
    fcwt = fcwt_ref[...]                                      # (C, FLAT)

    if P > 1:
        # Hoist per-k weight splats out of the window loop (JAX does not CSE broadcasts).
        w_k = [jnp.broadcast_to(w[:, k][:, None, None], (OUT, P, TB)) for k in range(K)]
        # ONE combine pass fused with pooling + brelu + FC streaming.  The per-window
        # (OUT,P,TB) accumulator lives in vregs; nothing of size OUT*N*TB is ever built.
        # bias+ReLU commute with max, so they run once per window (P x less VPU work).
        # torch max_pool1d truncates the N % P remainder; windows stop at n_pool*P, so
        # zero-padded nodes (index >= original N) can never leak into a window.
        for j in range(n_pool):
            lo = j * P
            acc = w_k[0] * t_list[0][lo:lo + P, :][None]
            for k in range(1, K):
                acc = acc + w_k[k] * t_list[k][lo:lo + P, :][None]
            pooled = jnp.maximum(jnp.max(acc, axis=1) + bias_b, 0.0)       # (OUT, TB)
            # Stream the FC head (flat column index = j*OUT + o, torch order).
            logits = logits + jnp.dot(fcwt[:, j * OUT:(j + 1) * OUT], pooled,
                                      preferred_element_type=jnp.float32)
    else:
        # pooling_size == 1 fast path: no pooling -> skip the per-window loop entirely.
        # Single combine pass, bias+ReLU, then one lane-dense FC matmul (the FC weight is
        # pre-permuted + node-padded host-side to this (OUT, Np)-major flatten order).
        np_nodes = t_list[0].shape[0]
        w_k = [jnp.broadcast_to(w[:, k][:, None, None], (OUT, np_nodes, TB))
               for k in range(K)]
        acc = w_k[0] * t_list[0][None]
        for k in range(1, K):
            acc = acc + w_k[k] * t_list[k][None]
        z = jnp.maximum(acc + bias_b[:, None, :], 0.0)                      # (OUT, Np, TB)
        logits = logits + jnp.dot(fcwt, z.reshape(OUT * np_nodes, TB),
                                  preferred_element_type=jnp.float32)

    o_ref[...] = logits.astype(o_ref.dtype)


# ---------------------------------------------------------------------------
# Forward wrapper (gc_layers = 1: one PolyGCLayer + one Linear head, fully fused)
# ---------------------------------------------------------------------------
def chebyshev_cgcnn_forward(x, params, *, poly_degree, pooling_size,
                            use_bf16_matmul=False):
    """x: (B, N) graph signals.  Returns (B, classes_num) logits."""
    B, N = x.shape
    lap = params["laplacian"]          # (N, N) dense rescaled Laplacian
    gc_w = params["gc_weight"]         # (F*K, OUT), F == 1  (torch layout, row = k)
    gc_b = params["gc_bias"]           # (1, 1, OUT)
    fc_w = params["fc_weight"]         # (flatten, C)   (= torch fc.weight.T)
    fc_b = params["fc_bias"]           # (C,)

    K = poly_degree
    P = pooling_size
    OUT = gc_w.shape[1]
    C = fc_w.shape[1]
    n_pool = N // P if P > 1 else N    # torch max_pool1d truncates the remainder
    flatten = n_pool * OUT
    assert n_pool > 0
    assert fc_w.shape[0] == flatten, "fc weight does not match pooled GC output size"

    # ---- layout plumbing only (no compute hoisted out of the kernel) ----
    # MXU / lane alignment: zero-pad nodes and batch to multiples of 128.  Padded nodes
    # are appended AFTER the pooling-truncated range (windows use the original N), padded
    # batch columns are sliced off below — results are bit-for-bit unaffected.
    N_pad = _round_up(N, _LANE)
    B_pad = _round_up(B, _LANE)

    lap_p = jnp.pad(lap, ((0, N_pad - N), (0, N_pad - N)))
    if use_bf16_matmul:
        # bf16 L in HBM: halves its DMA bytes + VMEM footprint; recurrence carry stays f32.
        lap_p = lap_p.astype(jnp.bfloat16)
    xt = jnp.pad(jnp.transpose(x), ((0, N_pad - N), (0, B_pad - B)))     # (N_pad, B_pad)

    w_ok = jnp.transpose(gc_w)                      # (OUT, K): W[o, k]
    b_o1 = gc_b.reshape(OUT, 1)
    fcb_c1 = fc_b.reshape(C, 1)

    if P > 1:
        fcw_t = jnp.transpose(fc_w)                 # (C, flatten), torch col order j*OUT+o
        flat_k = flatten
    else:
        # P==1 kernel path flattens (OUT, N_pad) filter-major; permute + node-pad the FC
        # weight to match (padded-node columns are zero, so the result is exact).
        fcw_perm = jnp.transpose(fc_w.reshape(N, OUT, C), (1, 0, 2))     # (OUT, N, C)
        fcw_perm = jnp.pad(fcw_perm, ((0, 0), (0, N_pad - N), (0, 0)))
        fcw_t = jnp.transpose(fcw_perm.reshape(OUT * N_pad, C))          # (C, OUT*N_pad)
        flat_k = OUT * N_pad

    # Batch-lane tiling: keep >=2 grid steps when the padded batch allows it so the
    # "parallel" batch axis can shard across v7x's two TensorCores.
    TB = 256 if (B_pad >= 512 and B_pad % 256 == 0) else _LANE
    grid = (B_pad // TB,)

    # Generation-aware VMEM budget (~20% headroom; v7x only has 64 MiB per TensorCore).
    lap_isz = 2 if use_bf16_matmul else 4
    vmem_bytes = (2 * N_pad * N_pad * lap_isz                 # L (pipeline double-buffers)
                  + 2 * N_pad * TB * 4                        # x^T batch tile
                  + 2 * max(C, 8) * TB * 4                    # logits tile
                  + 2 * max(C, 8) * _round_up(flat_k, _LANE) * 4    # FC weight^T
                  + K * N_pad * TB * 4                        # in-kernel Chebyshev basis
                  + (OUT * max(P, 8) * TB * 4 if P > 1 else OUT * N_pad * TB * 4)
                  + (4 << 20))                                # small operands + regalloc
    cap = max(int(0.8 * _vmem_capacity_bytes()), 16 << 20)
    vmem_limit = int(min(max(int(vmem_bytes), 32 << 20), cap))
    # TODO(synk): single-buffer the grid-invariant operands (L, GC/FC weights) via
    # pl.BlockSpec(..., pipeline_mode=pl.Buffered(1)) once confirmed for the top-level
    # pipeline, and for N >~ 2k on v7x stream L from HBM (memory_space=pl.ANY) in column
    # strips with a manual double buffer instead of holding all of L in VMEM.

    combine_nodes = n_pool * P if P > 1 else N_pad
    cost = pl.CostEstimate(
        flops=int(grid[0] * (2 * (K - 1) * N_pad * N_pad * TB      # Chebyshev recurrence
                             + 2 * K * OUT * combine_nodes * TB    # filter combine
                             + 2 * C * flat_k * TB)),              # FC head
        transcendentals=0,
        bytes_accessed=int(N_pad * N_pad * lap_isz + N_pad * B_pad * 4
                           + C * B_pad * 4 + C * flat_k * 4 + (OUT * (K + 1) + C) * 4),
    )

    kernel = functools.partial(_fused_gc_fc_kernel, poly_degree=K, pooling_size=P,
                               n_pool=n_pool, use_bf16=use_bf16_matmul)

    logits_t = pl.pallas_call(
        kernel,
        out_shape=jax.ShapeDtypeStruct((C, B_pad), x.dtype),
        grid_spec=pltpu.PrefetchScalarGridSpec(
            num_scalar_prefetch=0,
            grid=grid,
            in_specs=[
                pl.BlockSpec((N_pad, N_pad), lambda b: (0, 0)),    # Laplacian (shared)
                pl.BlockSpec((N_pad, TB), lambda b: (0, b)),       # x^T batch-lane tile
                pl.BlockSpec((OUT, K), lambda b: (0, 0)),          # GC weight
                pl.BlockSpec((OUT, 1), lambda b: (0, 0)),          # GC bias
                pl.BlockSpec((C, flat_k), lambda b: (0, 0)),       # FC weight^T
                pl.BlockSpec((C, 1), lambda b: (0, 0)),            # FC bias
            ],
            out_specs=pl.BlockSpec((C, TB), lambda b: (0, b)),
        ),
        compiler_params=pltpu.CompilerParams(
            dimension_semantics=("parallel",),      # batch tiles shard across TCs (v7x)
            vmem_limit_bytes=vmem_limit,
        ),
        cost_estimate=cost,
    )(lap_p, xt, w_ok, b_o1, fcw_t, fcb_c1)

    return jnp.transpose(logits_t)[:B]              # drop batch padding -> (B, classes)


# ---------------------------------------------------------------------------
# Deterministic parameter construction (shapes follow the module's __init__)
# ---------------------------------------------------------------------------
def init_params(key, *, nodes, poly_degree, filter_size, pooling_size, classes_num):
    k1, k2, k3, k4, k5 = jax.random.split(key, 5)

    # Synthetic rescaled graph Laplacian (stand-in for graph.rescale_L(L, lmax=2)).
    a = jax.random.uniform(k1, (nodes, nodes), jnp.float32)
    a = 0.5 * (a + a.T)
    d = jnp.sum(a, axis=1)
    lap = jnp.diag(d) - a
    lap = 2.0 * lap / (2.0 * jnp.max(d)) - jnp.eye(nodes, dtype=jnp.float32)

    in_ch = 1 * poly_degree
    gc_w = 0.1 * jax.random.truncated_normal(k2, -2.0, 2.0, (in_ch, filter_size), jnp.float32)
    gc_b = 0.1 * jax.random.truncated_normal(k3, -2.0, 2.0, (1, 1, filter_size), jnp.float32)

    flatten = (nodes // pooling_size) * filter_size
    bound = 1.0 / np.sqrt(flatten)
    fc_w = jax.random.uniform(k4, (flatten, classes_num), jnp.float32, -bound, bound)
    fc_b = jax.random.uniform(k5, (classes_num,), jnp.float32, -bound, bound)

    return dict(laplacian=lap, gc_weight=gc_w, gc_bias=gc_b,
                fc_weight=fc_w, fc_bias=fc_b)


# ---------------------------------------------------------------------------
# Pure-JAX reference mirroring the torch code exactly (sanity check)
# ---------------------------------------------------------------------------
def _reference_forward(x, params, K, P):
    L = params["laplacian"]
    w, b = params["gc_weight"], params["gc_bias"]
    B, N = x.shape
    x3 = x[:, :, None]
    x0 = x3.transpose(1, 2, 0).reshape(N, 1 * B)
    ts = [x0]
    if K > 1:
        ts.append(L @ x0)
    for _ in range(2, K):
        ts.append(2.0 * (L @ ts[-1]) - ts[-2])
    xs = jnp.stack(ts, 0).reshape(K, N, 1, B).transpose(3, 1, 2, 0).reshape(B * N, 1 * K)
    y = (xs @ w).reshape(B, N, -1)
    y = jax.nn.relu(y + b)
    OUT = y.shape[-1]
    if P > 1:
        y = y.reshape(B, N // P, P, OUT).max(axis=2)
    flat = y.reshape(B, -1)
    return flat @ params["fc_weight"] + params["fc_bias"]


if __name__ == "__main__":
    B, N = 2, 16                  # batch, graph nodes
    K, FILT, P, C = 4, 32, 4, 10  # poly_degree, filter_size, pooling_size, classes_num

    key = jax.random.PRNGKey(0)
    pkey, xkey = jax.random.split(key)
    params = init_params(pkey, nodes=N, poly_degree=K, filter_size=FILT,
                         pooling_size=P, classes_num=C)
    x = jax.random.normal(xkey, (B, N), jnp.float32)

    fwd = jax.jit(functools.partial(chebyshev_cgcnn_forward,
                                    poly_degree=K, pooling_size=P))
    out = jax.block_until_ready(fwd(x, params))
    assert out.shape == (B, C)

    ref = jax.block_until_ready(_reference_forward(x, params, K, P))
    np.testing.assert_allclose(np.asarray(out), np.asarray(ref), rtol=2e-2, atol=2e-2)

    print("KERNEL_OK")
</pallas_src>

<mosaic_0001>
module attributes {stable_mosaic.version = 11 : i64} {
  func.func @_fused_gc_fc_kernel(%arg0: i32, %arg1: memref<128x128xf32, #tpu.memory_space<vmem>>, %arg2: memref<128x128xf32, #tpu.memory_space<vmem>>, %arg3: memref<32x4xf32, #tpu.memory_space<vmem>>, %arg4: memref<32x1xf32, #tpu.memory_space<vmem>>, %arg5: memref<10x128xf32, #tpu.memory_space<vmem>>, %arg6: memref<10x1xf32, #tpu.memory_space<vmem>>, %arg7: memref<10x128xf32, #tpu.memory_space<vmem>>) attributes {dimension_semantics = [#tpu.dimension_semantics<parallel>], iteration_bounds = array<i64: 1>, scalar_prefetch = 0 : i64, scratch_operands = 0 : i64, tpu.core_type = #tpu.core_type<tc>, window_params = [{pipeline_mode = #tpu.pipeline_mode<synchronous>, transform_indices = @transform_0, window_bounds = array<i64: 128, 128>}, {transform_indices = @transform_1, window_bounds = array<i64: 128, 128>}, {pipeline_mode = #tpu.pipeline_mode<synchronous>, transform_indices = @transform_2, window_bounds = array<i64: 32, 4>}, {pipeline_mode = #tpu.pipeline_mode<synchronous>, transform_indices = @transform_3, window_bounds = array<i64: 32, 1>}, {pipeline_mode = #tpu.pipeline_mode<synchronous>, transform_indices = @transform_4, window_bounds = array<i64: 10, 128>}, {pipeline_mode = #tpu.pipeline_mode<synchronous>, transform_indices = @transform_5, window_bounds = array<i64: 10, 1>}, {transform_indices = @transform_6, window_bounds = array<i64: 10, 128>}]} {
    %c0 = arith.constant 0 : index
    %c0_0 = arith.constant 0 : index
    %0 = vector.load %arg1[%c0, %c0_0] : memref<128x128xf32, #tpu.memory_space<vmem>>, vector<128x128xf32>
    %c0_1 = arith.constant 0 : index
    %c0_2 = arith.constant 0 : index
    %1 = vector.load %arg2[%c0_1, %c0_2] : memref<128x128xf32, #tpu.memory_space<vmem>>, vector<128x128xf32>
    %cst = arith.constant dense<0.000000e+00> : vector<128x128xf32>
    %2 = tpu.matmul %0, %1, %cst {dimension_numbers = #tpu.dot_dimension_numbers<[1], [0], [0], [1], [0, 0, 1, 1], [], []>} : vector<128x128xf32>, vector<128x128xf32>, vector<128x128xf32> -> vector<128x128xf32>
    %cst_3 = arith.constant dense<0.000000e+00> : vector<128x128xf32>
    %3 = tpu.matmul %0, %2, %cst_3 {dimension_numbers = #tpu.dot_dimension_numbers<[1], [0], [0], [1], [0, 0, 1, 1], [], []>} : vector<128x128xf32>, vector<128x128xf32>, vector<128x128xf32> -> vector<128x128xf32>
    %cst_4 = arith.constant 2.000000e+00 : f32
    %4 = vector.broadcast %cst_4 : f32 to vector<128x128xf32>
    %5 = arith.mulf %4, %3 : vector<128x128xf32>
    %6 = arith.subf %5, %1 : vector<128x128xf32>
    %cst_5 = arith.constant dense<0.000000e+00> : vector<128x128xf32>
    %7 = tpu.matmul %0, %6, %cst_5 {dimension_numbers = #tpu.dot_dimension_numbers<[1], [0], [0], [1], [0, 0, 1, 1], [], []>} : vector<128x128xf32>, vector<128x128xf32>, vector<128x128xf32> -> vector<128x128xf32>
    %cst_6 = arith.constant 2.000000e+00 : f32
    %8 = vector.broadcast %cst_6 : f32 to vector<128x128xf32>
    %9 = arith.mulf %8, %7 : vector<128x128xf32>
    %10 = arith.subf %9, %2 : vector<128x128xf32>
    %c0_7 = arith.constant 0 : index
    %c0_8 = arith.constant 0 : index
    %11 = vector.load %arg3[%c0_7, %c0_8] : memref<32x4xf32, #tpu.memory_space<vmem>>, vector<32x4xf32>
    %c0_9 = arith.constant 0 : index
    %c0_10 = arith.constant 0 : index
    %12 = vector.load %arg4[%c0_9, %c0_10] : memref<32x1xf32, #tpu.memory_space<vmem>>, vector<32x1xf32>
    %13 = vector.shape_cast %12 : vector<32x1xf32> to vector<32x1xf32>
    %14 = vector.broadcast %13 : vector<32x1xf32> to vector<32x128xf32>
    %c0_11 = arith.constant 0 : index
    %c0_12 = arith.constant 0 : index
    %15 = vector.load %arg6[%c0_11, %c0_12] : memref<10x1xf32, #tpu.memory_space<vmem>>, vector<10x1xf32>
    %16 = vector.shape_cast %15 : vector<10x1xf32> to vector<10x1xf32>
    %17 = vector.broadcast %16 : vector<10x1xf32> to vector<10x128xf32>
    %c0_13 = arith.constant 0 : index
    %c0_14 = arith.constant 0 : index
    %18 = vector.load %arg5[%c0_13, %c0_14] : memref<10x128xf32, #tpu.memory_space<vmem>>, vector<10x128xf32>
    %19 = vector.extract_strided_slice %11 {offsets = [0, 0], sizes = [32, 1], strides = [1, 1]} : vector<32x4xf32> to vector<32x1xf32>
    %20 = vector.shape_cast %19 : vector<32x1xf32> to vector<32xf32>
    %21 = vector.shape_cast %20 : vector<32xf32> to vector<32x1x1xf32>
    %22 = vector.shape_cast %21 : vector<32x1x1xf32> to vector<32x1x1xf32>
    %23 = vector.broadcast %22 : vector<32x1x1xf32> to vector<32x4x128xf32>
    %24 = vector.extract_strided_slice %11 {offsets = [0, 1], sizes = [32, 1], strides = [1, 1]} : vector<32x4xf32> to vector<32x1xf32>
    %25 = vector.shape_cast %24 : vector<32x1xf32> to vector<32xf32>
    %26 = vector.shape_cast %25 : vector<32xf32> to vector<32x1x1xf32>
    %27 = vector.shape_cast %26 : vector<32x1x1xf32> to vector<32x1x1xf32>
    %28 = vector.broadcast %27 : vector<32x1x1xf32> to vector<32x4x128xf32>
    %29 = vector.extract_strided_slice %11 {offsets = [0, 2], sizes = [32, 1], strides = [1, 1]} : vector<32x4xf32> to vector<32x1xf32>
    %30 = vector.shape_cast %29 : vector<32x1xf32> to vector<32xf32>
    %31 = vector.shape_cast %30 : vector<32xf32> to vector<32x1x1xf32>
    %32 = vector.shape_cast %31 : vector<32x1x1xf32> to vector<32x1x1xf32>
    %33 = vector.broadcast %32 : vector<32x1x1xf32> to vector<32x4x128xf32>
    %34 = vector.extract_strided_slice %11 {offsets = [0, 3], sizes = [32, 1], strides = [1, 1]} : vector<32x4xf32> to vector<32x1xf32>
    %35 = vector.shape_cast %34 : vector<32x1xf32> to vector<32xf32>
    %36 = vector.shape_cast %35 : vector<32xf32> to vector<32x1x1xf32>
    %37 = vector.shape_cast %36 : vector<32x1x1xf32> to vector<32x1x1xf32>
    %38 = vector.broadcast %37 : vector<32x1x1xf32> to vector<32x4x128xf32>
    %39 = vector.extract_strided_slice %1 {offsets = [0, 0], sizes = [4, 128], strides = [1, 1]} : vector<128x128xf32> to vector<4x128xf32>
    %40 = vector.shape_cast %39 : vector<4x128xf32> to vector<1x4x128xf32>
    %41 = vector.broadcast %40 : vector<1x4x128xf32> to vector<32x4x128xf32>
    %42 = arith.mulf %23, %41 : vector<32x4x128xf32>
    %43 = vector.extract_strided_slice %2 {offsets = [0, 0], sizes = [4, 128], strides = [1, 1]} : vector<128x128xf32> to vector<4x128xf32>
    %44 = vector.shape_cast %43 : vector<4x128xf32> to vector<1x4x128xf32>
    %45 = vector.broadcast %44 : vector<1x4x128xf32> to vector<32x4x128xf32>
    %46 = arith.mulf %28, %45 : vector<32x4x128xf32>
    %47 = arith.addf %42, %46 : vector<32x4x128xf32>
    %48 = vector.extract_strided_slice %6 {offsets = [0, 0], sizes = [4, 128], strides = [1, 1]} : vector<128x128xf32> to vector<4x128xf32>
    %49 = vector.shape_cast %48 : vector<4x128xf32> to vector<1x4x128xf32>
    %50 = vector.broadcast %49 : vector<1x4x128xf32> to vector<32x4x128xf32>
    %51 = arith.mulf %33, %50 : vector<32x4x128xf32>
    %52 = arith.addf %47, %51 : vector<32x4x128xf32>
    %53 = vector.extract_strided_slice %10 {offsets = [0, 0], sizes = [4, 128], strides = [1, 1]} : vector<128x128xf32> to vector<4x128xf32>
    %54 = vector.shape_cast %53 : vector<4x128xf32> to vector<1x4x128xf32>
    %55 = vector.broadcast %54 : vector<1x4x128xf32> to vector<32x4x128xf32>
    %56 = arith.mulf %38, %55 : vector<32x4x128xf32>
    %57 = arith.addf %52, %56 : vector<32x4x128xf32>
    %cst_15 = arith.constant dense<0xFF800000> : vector<32x128xf32>
    %58 = vector.multi_reduction <maximumf>, %57, %cst_15 [1] : vector<32x4x128xf32> to vector<32x128xf32>
    %59 = arith.addf %58, %14 : vector<32x128xf32>
    %cst_16 = arith.constant 0.000000e+00 : f32
    %60 = vector.broadcast %cst_16 : f32 to vector<32x128xf32>
    %61 = arith.maximumf %59, %60 : vector<32x128xf32>
    %62 = vector.extract_strided_slice %18 {offsets = [0, 0], sizes = [10, 32], strides = [1, 1]} : vector<10x128xf32> to vector<10x32xf32>
    %cst_17 = arith.constant dense<0.000000e+00> : vector<10x128xf32>
    %63 = tpu.matmul %62, %61, %cst_17 {dimension_numbers = #tpu.dot_dimension_numbers<[1], [0], [0], [1], [0, 0, 1, 1], [], []>} : vector<10x32xf32>, vector<32x128xf32>, vector<10x128xf32> -> vector<10x128xf32>
    %64 = arith.addf %17, %63 : vector<10x128xf32>
    %65 = vector.extract_strided_slice %1 {offsets = [4, 0], sizes = [4, 128], strides = [1, 1]} : vector<128x128xf32> to vector<4x128xf32>
    %66 = vector.shape_cast %65 : vector<4x128xf32> to vector<1x4x128xf32>
    %67 = vector.broadcast %66 : vector<1x4x128xf32> to vector<32x4x128xf32>
    %68 = arith.mulf %23, %67 : vector<32x4x128xf32>
    %69 = vector.extract_strided_slice %2 {offsets = [4, 0], sizes = [4, 128], strides = [1, 1]} : vector<128x128xf32> to vector<4x128xf32>
    %70 = vector.shape_cast %69 : vector<4x128xf32> to vector<1x4x128xf32>
    %71 = vector.broadcast %70 : vector<1x4x128xf32> to vector<32x4x128xf32>
    %72 = arith.mulf %28, %71 : vector<32x4x128xf32>
    %73 = arith.addf %68, %72 : vector<32x4x128xf32>
    %74 = vector.extract_strided_slice %6 {offsets = [4, 0], sizes = [4, 128], strides = [1, 1]} : vector<128x128xf32> to vector<4x128xf32>
    %75 = vector.shape_cast %74 : vector<4x128xf32> to vector<1x4x128xf32>
    %76 = vector.broadcast %75 : vector<1x4x128xf32> to vector<32x4x128xf32>
    %77 = arith.mulf %33, %76 : vector<32x4x128xf32>
    %78 = arith.addf %73, %77 : vector<32x4x128xf32>
    %79 = vector.extract_strided_slice %10 {offsets = [4, 0], sizes = [4, 128], strides = [1, 1]} : vector<128x128xf32> to vector<4x128xf32>
    %80 = vector.shape_cast %79 : vector<4x128xf32> to vector<1x4x128xf32>
    %81 = vector.broadcast %80 : vector<1x4x128xf32> to vector<32x4x128xf32>
    %82 = arith.mulf %38, %81 : vector<32x4x128xf32>
    %83 = arith.addf %78, %82 : vector<32x4x128xf32>
    %cst_18 = arith.constant dense<0xFF800000> : vector<32x128xf32>
    %84 = vector.multi_reduction <maximumf>, %83, %cst_18 [1] : vector<32x4x128xf32> to vector<32x128xf32>
    %85 = arith.addf %84, %14 : vector<32x128xf32>
    %cst_19 = arith.constant 0.000000e+00 : f32
    %86 = vector.broadcast %cst_19 : f32 to vector<32x128xf32>
    %87 = arith.maximumf %85, %86 : vector<32x128xf32>
    %88 = vector.extract_strided_slice %18 {offsets = [0, 32], sizes = [10, 32], strides = [1, 1]} : vector<10x128xf32> to vector<10x32xf32>
    %cst_20 = arith.constant dense<0.000000e+00> : vector<10x128xf32>
    %89 = tpu.matmul %88, %87, %cst_20 {dimension_numbers = #tpu.dot_dimension_numbers<[1], [0], [0], [1], [0, 0, 1, 1], [], []>} : vector<10x32xf32>, vector<32x128xf32>, vector<10x128xf32> -> vector<10x128xf32>
    %90 = arith.addf %64, %89 : vector<10x128xf32>
    %91 = vector.extract_strided_slice %1 {offsets = [8, 0], sizes = [4, 128], strides = [1, 1]} : vector<128x128xf32> to vector<4x128xf32>
    %92 = vector.shape_cast %91 : vector<4x128xf32> to vector<1x4x128xf32>
    %93 = vector.broadcast %92 : vector<1x4x128xf32> to vector<32x4x128xf32>
    %94 = arith.mulf %23, %93 : vector<32x4x128xf32>
    %95 = vector.extract_strided_slice %2 {offsets = [8, 0], sizes = [4, 128], strides = [1, 1]} : vector<128x128xf32> to vector<4x128xf32>
    %96 = vector.shape_cast %95 : vector<4x128xf32> to vector<1x4x128xf32>
    %97 = vector.broadcast %96 : vector<1x4x128xf32> to vector<32x4x128xf32>
    %98 = arith.mulf %28, %97 : vector<32x4x128xf32>
    %99 = arith.addf %94, %98 : vector<32x4x128xf32>
    %100 = vector.extract_strided_slice %6 {offsets = [8, 0], sizes = [4, 128], strides = [1, 1]} : vector<128x128xf32> to vector<4x128xf32>
    %101 = vector.shape_cast %100 : vector<4x128xf32> to vector<1x4x128xf32>
    %102 = vector.broadcast %101 : vector<1x4x128xf32> to vector<32x4x128xf32>
    %103 = arith.mulf %33, %102 : vector<32x4x128xf32>
    %104 = arith.addf %99, %103 : vector<32x4x128xf32>
    %105 = vector.extract_strided_slice %10 {offsets = [8, 0], sizes = [4, 128], strides = [1, 1]} : vector<128x128xf32> to vector<4x128xf32>
    %106 = vector.shape_cast %105 : vector<4x128xf32> to vector<1x4x128xf32>
    %107 = vector.broadcast %106 : vector<1x4x128xf32> to vector<32x4x128xf32>
    %108 = arith.mulf %38, %107 : vector<32x4x128xf32>
    %109 = arith.addf %104, %108 : vector<32x4x128xf32>
    %cst_21 = arith.constant dense<0xFF800000> : vector<32x128xf32>
    %110 = vector.multi_reduction <maximumf>, %109, %cst_21 [1] : vector<32x4x128xf32> to vector<32x128xf32>
    %111 = arith.addf %110, %14 : vector<32x128xf32>
    %cst_22 = arith.constant 0.000000e+00 : f32
    %112 = vector.broadcast %cst_22 : f32 to vector<32x128xf32>
    %113 = arith.maximumf %111, %112 : vector<32x128xf32>
    %114 = vector.extract_strided_slice %18 {offsets = [0, 64], sizes = [10, 32], strides = [1, 1]} : vector<10x128xf32> to vector<10x32xf32>
    %cst_23 = arith.constant dense<0.000000e+00> : vector<10x128xf32>
    %115 = tpu.matmul %114, %113, %cst_23 {dimension_numbers = #tpu.dot_dimension_numbers<[1], [0], [0], [1], [0, 0, 1, 1], [], []>} : vector<10x32xf32>, vector<32x128xf32>, vector<10x128xf32> -> vector<10x128xf32>
    %116 = arith.addf %90, %115 : vector<10x128xf32>
    %117 = vector.extract_strided_slice %1 {offsets = [12, 0], sizes = [4, 128], strides = [1, 1]} : vector<128x128xf32> to vector<4x128xf32>
    %118 = vector.shape_cast %117 : vector<4x128xf32> to vector<1x4x128xf32>
    %119 = vector.broadcast %118 : vector<1x4x128xf32> to vector<32x4x128xf32>
    %120 = arith.mulf %23, %119 : vector<32x4x128xf32>
    %121 = vector.extract_strided_slice %2 {offsets = [12, 0], sizes = [4, 128], strides = [1, 1]} : vector<128x128xf32> to vector<4x128xf32>
    %122 = vector.shape_cast %121 : vector<4x128xf32> to vector<1x4x128xf32>
    %123 = vector.broadcast %122 : vector<1x4x128xf32> to vector<32x4x128xf32>
    %124 = arith.mulf %28, %123 : vector<32x4x128xf32>
    %125 = arith.addf %120, %124 : vector<32x4x128xf32>
    %126 = vector.extract_strided_slice %6 {offsets = [12, 0], sizes = [4, 128], strides = [1, 1]} : vector<128x128xf32> to vector<4x128xf32>
    %127 = vector.shape_cast %126 : vector<4x128xf32> to vector<1x4x128xf32>
    %128 = vector.broadcast %127 : vector<1x4x128xf32> to vector<32x4x128xf32>
    %129 = arith.mulf %33, %128 : vector<32x4x128xf32>
    %130 = arith.addf %125, %129 : vector<32x4x128xf32>
    %131 = vector.extract_strided_slice %10 {offsets = [12, 0], sizes = [4, 128], strides = [1, 1]} : vector<128x128xf32> to vector<4x128xf32>
    %132 = vector.shape_cast %131 : vector<4x128xf32> to vector<1x4x128xf32>
    %133 = vector.broadcast %132 : vector<1x4x128xf32> to vector<32x4x128xf32>
    %134 = arith.mulf %38, %133 : vector<32x4x128xf32>
    %135 = arith.addf %130, %134 : vector<32x4x128xf32>
    %cst_24 = arith.constant dense<0xFF800000> : vector<32x128xf32>
    %136 = vector.multi_reduction <maximumf>, %135, %cst_24 [1] : vector<32x4x128xf32> to vector<32x128xf32>
    %137 = arith.addf %136, %14 : vector<32x128xf32>
    %cst_25 = arith.constant 0.000000e+00 : f32
    %138 = vector.broadcast %cst_25 : f32 to vector<32x128xf32>
    %139 = arith.maximumf %137, %138 : vector<32x128xf32>
    %140 = vector.extract_strided_slice %18 {offsets = [0, 96], sizes = [10, 32], strides = [1, 1]} : vector<10x128xf32> to vector<10x32xf32>
    %cst_26 = arith.constant dense<0.000000e+00> : vector<10x128xf32>
    %141 = tpu.matmul %140, %139, %cst_26 {dimension_numbers = #tpu.dot_dimension_numbers<[1], [0], [0], [1], [0, 0, 1, 1], [], []>} : vector<10x32xf32>, vector<32x128xf32>, vector<10x128xf32> -> vector<10x128xf32>
    %142 = arith.addf %116, %141 : vector<10x128xf32>
    %c0_27 = arith.constant 0 : index
    %c0_28 = arith.constant 0 : index
    %143 = vector.load %arg7[%c0_27, %c0_28] : memref<10x128xf32, #tpu.memory_space<vmem>>, vector<10x128xf32>
    tpu.vector_store %arg7[%c0_27, %c0_28], %142 {strides = array<i32>} : memref<10x128xf32, #tpu.memory_space<vmem>>, vector<10x128xf32>,
    return
  }
  func.func @transform_0(%arg0: i32) -> (i32, i32) {
    %c0_i32 = arith.constant 0 : i32
    %c0_i32_0 = arith.constant 0 : i32
    %c0_i32_1 = arith.constant 0 : i32
    return %c0_i32, %c0_i32_0 : i32, i32
  }
  func.func @transform_1(%arg0: i32) -> (i32, i32) {
    %c0_i32 = arith.constant 0 : i32
    %c0_i32_0 = arith.constant 0 : i32
    return %c0_i32, %arg0 : i32, i32
  }
  func.func @transform_2(%arg0: i32) -> (i32, i32) {
    %c0_i32 = arith.constant 0 : i32
    %c0_i32_0 = arith.constant 0 : i32
    %c0_i32_1 = arith.constant 0 : i32
    return %c0_i32, %c0_i32_0 : i32, i32
  }
  func.func @transform_3(%arg0: i32) -> (i32, i32) {
    %c0_i32 = arith.constant 0 : i32
    %c0_i32_0 = arith.constant 0 : i32
    %c0_i32_1 = arith.constant 0 : i32
    return %c0_i32, %c0_i32_0 : i32, i32
  }
  func.func @transform_4(%arg0: i32) -> (i32, i32) {
    %c0_i32 = arith.constant 0 : i32
    %c0_i32_0 = arith.constant 0 : i32
    %c0_i32_1 = arith.constant 0 : i32
    return %c0_i32, %c0_i32_0 : i32, i32
  }
  func.func @transform_5(%arg0: i32) -> (i32, i32) {
    %c0_i32 = arith.constant 0 : i32
    %c0_i32_0 = arith.constant 0 : i32
    %c0_i32_1 = arith.constant 0 : i32
    return %c0_i32, %c0_i32_0 : i32, i32
  }
  func.func @transform_6(%arg0: i32) -> (i32, i32) {
    %c0_i32 = arith.constant 0 : i32
    %c0_i32_0 = arith.constant 0 : i32
    return %c0_i32, %arg0 : i32, i32
  }
}

</mosaic_0001>

<llo_original>
// kernel: chebyshev_cgcnn_forward.1
$region0: #{chebyshev_cgcnn_forward.1}
  #allocation0 [shape = 'u32[]', space=smem, size = 0x4, offset = 0x4, fixed_abs, tag = 'smem constant byte address 0x4 - core index']
  #allocation1 [shape = 'u32[72,128]{1,0:T(1,128)}', space=vmem, size = 0x9000, scoped, tag = 'internal scratch']
  %s0 = inlined_call_operand.vmem [shape: f32[128,128], index: 0, kind: input, shape index: {}]
  %s1 = inlined_call_operand.vmem [shape: f32[128,128], index: 1, kind: input, shape index: {}]
  %s2 = inlined_call_operand.vmem [shape: f32[32,4], index: 2, kind: input, shape index: {}]
  %s3 = inlined_call_operand.vmem [shape: f32[32,1], index: 3, kind: input, shape index: {}]
  %s4 = inlined_call_operand.vmem [shape: f32[10,128], index: 4, kind: input, shape index: {}]
  %s5 = inlined_call_operand.vmem [shape: f32[10,1], index: 5, kind: input, shape index: {}]
  %s6 = inlined_call_operand.vmem [shape: f32[10,128], index: 6, kind: output, shape index: {}]
  %s7 = sld [smem:[#allocation0]]
  $region34: #{chebyshev_cgcnn_forward.1} parent=0
    _
  %s9 = ssub.s32 1, %s7
  %s10 = scalar_select 0, %s9, %s7
  // Predicated region
  $region2: #{chebyshev_cgcnn_forward.1} parent=0 // pred_check
    _
  $region3: #{chebyshev_cgcnn_forward.1} parent=0 // pred_check_branch
    %12 = sbr.rel (0) target = $region5
  $region4: #{chebyshev_cgcnn_forward.1} parent=0 // pred_region
    _
  $region5: #{chebyshev_cgcnn_forward.1} parent=0 // pred_fallthru
    _
  // Predicated region
  $region6: #{chebyshev_cgcnn_forward.1} parent=0 // pred_check
    _
  $region7: #{chebyshev_cgcnn_forward.1} parent=0 // pred_check_branch
    %14 = sbr.rel (0) target = $region9
  $region8: #{chebyshev_cgcnn_forward.1} parent=0 // pred_region
    _
  $region9: #{chebyshev_cgcnn_forward.1} parent=0 // pred_fallthru
    _
  // Predicated region
  $region10: #{chebyshev_cgcnn_forward.1} parent=0 // pred_check
    _
  $region11: #{chebyshev_cgcnn_forward.1} parent=0 // pred_check_branch
    %16 = sbr.rel (0) target = $region13
  $region12: #{chebyshev_cgcnn_forward.1} parent=0 // pred_region
    _
  $region13: #{chebyshev_cgcnn_forward.1} parent=0 // pred_fallthru
    _
  // Predicated region
  $region14: #{chebyshev_cgcnn_forward.1} parent=0 // pred_check
    _
  $region15: #{chebyshev_cgcnn_forward.1} parent=0 // pred_check_branch
    %18 = sbr.rel (0) target = $region17
  $region16: #{chebyshev_cgcnn_forward.1} parent=0 // pred_region
    _
  $region17: #{chebyshev_cgcnn_forward.1} parent=0 // pred_fallthru
    _
  // Predicated region
  $region18: #{chebyshev_cgcnn_forward.1} parent=0 // pred_check
    _
  $region19: #{chebyshev_cgcnn_forward.1} parent=0 // pred_check_branch
    %20 = sbr.rel (0) target = $region21
  $region20: #{chebyshev_cgcnn_forward.1} parent=0 // pred_region
    _
  $region21: #{chebyshev_cgcnn_forward.1} parent=0 // pred_fallthru
    _
  // Predicated region
  $region22: #{chebyshev_cgcnn_forward.1} parent=0 // pred_check
    _
  $region23: #{chebyshev_cgcnn_forward.1} parent=0 // pred_check_branch
    %22 = sbr.rel (0) target = $region25
  $region24: #{chebyshev_cgcnn_forward.1} parent=0 // pred_region
    _
  $region25: #{chebyshev_cgcnn_forward.1} parent=0 // pred_fallthru
    _
  %v23 = vld [vmem:[%s0] sm:$0xff]
  %v24 = vld [vmem:[%s0 + $0x8] sm:$0xff]
  %v25 = vld [vmem:[%s0 + $0x10] sm:$0xff]
  %v26 = vld [vmem:[%s0 + $0x18] sm:$0xff]
  %v27 = vld [vmem:[%s0 + $0x20] sm:$0xff]
  %v28 = vld [vmem:[%s0 + $0x28] sm:$0xff]
  %v29 = vld [vmem:[%s0 + $0x30] sm:$0xff]
  %v30 = vld [vmem:[%s0 + $0x38] sm:$0xff]
  %v31 = vld [vmem:[%s0 + $0x40] sm:$0xff]
  %v32 = vld [vmem:[%s0 + $0x48] sm:$0xff]
  %v33 = vld [vmem:[%s0 + $0x50] sm:$0xff]
  %v34 = vld [vmem:[%s0 + $0x58] sm:$0xff]
  %v35 = vld [vmem:[%s0 + $0x60] sm:$0xff]
  %v36 = vld [vmem:[%s0 + $0x68] sm:$0xff]
  %v37 = vld [vmem:[%s0 + $0x70] sm:$0xff]
  %v38 = vld [vmem:[%s0 + $0x78] sm:$0xff]
  %v39 = vld [vmem:[%s1] sm:$0xff]
  %v40 = vld [vmem:[%s1 + $0x8] sm:$0xff]
  %v41 = vld [vmem:[%s1 + $0x10] sm:$0xff]
  %v42 = vld [vmem:[%s1 + $0x18] sm:$0xff]
  %v43 = vld [vmem:[%s1 + $0x20] sm:$0xff]
  %v44 = vld [vmem:[%s1 + $0x28] sm:$0xff]
  %v45 = vld [vmem:[%s1 + $0x30] sm:$0xff]
  %v46 = vld [vmem:[%s1 + $0x38] sm:$0xff]
  %v47 = vld [vmem:[%s1 + $0x40] sm:$0xff]
  %v48 = vld [vmem:[%s1 + $0x48] sm:$0xff]
  %v49 = vld [vmem:[%s1 + $0x50] sm:$0xff]
  %v50 = vld [vmem:[%s1 + $0x58] sm:$0xff]
  %v51 = vld [vmem:[%s1 + $0x60] sm:$0xff]
  %v52 = vld [vmem:[%s1 + $0x68] sm:$0xff]
  %v53 = vld [vmem:[%s1 + $0x70] sm:$0xff]
  %v54 = vld [vmem:[%s1 + $0x78] sm:$0xff]
  %55 = vmatpush.msra.mxu0 %v54
  %56 = vmatpush.msra.mxu0 %v53
  %57 = vmatpush.msra.mxu0 %v52
  %58 = vmatpush.msra.mxu0 %v51
  %59 = vmatpush.msra.mxu0 %v50
  %60 = vmatpush.msra.mxu0 %v49
  %61 = vmatpush.msra.mxu0 %v48
  %62 = vmatpush.msra.mxu0 %v47
  %63 = vmatpush.msra.mxu0 %v46
  %64 = vmatpush.msra.mxu0 %v45
  %65 = vmatpush.msra.mxu0 %v44
  %66 = vmatpush.msra.mxu0 %v43
  %67 = vmatpush.msra.mxu0 %v42
  %68 = vmatpush.msra.mxu0 %v41
  %69 = vmatpush.msra.mxu0 %v40
  %70 = vmatpush.msra.mxu0 %v39
  %71 = vmatmul.f32.gmra.mxu0 %v23
  %v72 = vpop.f32.mrf.mxu0
  %v73 = vadd.f32 0.0, %v72
  %74 = vmatmul.f32.gmra.mxu0 %v24
  %v75 = vpop.f32.mrf.mxu0
  %v76 = vadd.f32 0.0, %v75
  %77 = vmatmul.f32.gmra.mxu0 %v25
  %v78 = vpop.f32.mrf.mxu0
  %v79 = vadd.f32 0.0, %v78
  %80 = vmatmul.f32.gmra.mxu0 %v26
  %v81 = vpop.f32.mrf.mxu0
  %v82 = vadd.f32 0.0, %v81
  %83 = vmatmul.f32.gmra.mxu0 %v27
  %v84 = vpop.f32.mrf.mxu0
  %v85 = vadd.f32 0.0, %v84
  %86 = vmatmul.f32.gmra.mxu0 %v28
  %v87 = vpop.f32.mrf.mxu0
  %v88 = vadd.f32 0.0, %v87
  %89 = vmatmul.f32.gmra.mxu0 %v29
  %v90 = vpop.f32.mrf.mxu0
  %v91 = vadd.f32 0.0, %v90
  %92 = vmatmul.f32.gmra.mxu0 %v30
  %v93 = vpop.f32.mrf.mxu0
  %v94 = vadd.f32 0.0, %v93
  %95 = vmatmul.f32.gmra.mxu0 %v31
  %v96 = vpop.f32.mrf.mxu0
  %v97 = vadd.f32 0.0, %v96
  %98 = vmatmul.f32.gmra.mxu0 %v32
  %v99 = vpop.f32.mrf.mxu0
  %v100 = vadd.f32 0.0, %v99
  %101 = vmatmul.f32.gmra.mxu0 %v33
  %v102 = vpop.f32.mrf.mxu0
  %v103 = vadd.f32 0.0, %v102
  %104 = vmatmul.f32.gmra.mxu0 %v34
  %v105 = vpop.f32.mrf.mxu0
  %v106 = vadd.f32 0.0, %v105
  %107 = vmatmul.f32.gmra.mxu0 %v35
  %v108 = vpop.f32.mrf.mxu0
  %v109 = vadd.f32 0.0, %v108
  %110 = vmatmul.f32.gmra.mxu0 %v36
  %v111 = vpop.f32.mrf.mxu0
  %v112 = vadd.f32 0.0, %v111
  %113 = vmatmul.f32.gmra.mxu0 %v37
  %v114 = vpop.f32.mrf.mxu0
  %v115 = vadd.f32 0.0, %v114
  %116 = vmatmul.f32.gmra.mxu0 %v38
  %v117 = vpop.f32.mrf.mxu0
  %v118 = vadd.f32 0.0, %v117
  %119 = vdwg.mxu0
  %120 = vmatpush.msra.mxu0 %v118
  %121 = vmatpush.msra.mxu0 %v115
  %122 = vmatpush.msra.mxu0 %v112
  %123 = vmatpush.msra.mxu0 %v109
  %124 = vmatpush.msra.mxu0 %v106
  %125 = vmatpush.msra.mxu0 %v103
  %126 = vmatpush.msra.mxu0 %v100
  %127 = vmatpush.msra.mxu0 %v97
  %128 = vmatpush.msra.mxu0 %v94
  %129 = vmatpush.msra.mxu0 %v91
  %130 = vmatpush.msra.mxu0 %v88
  %131 = vmatpush.msra.mxu0 %v85
  %132 = vmatpush.msra.mxu0 %v82
  %133 = vmatpush.msra.mxu0 %v79
  %134 = vmatpush.msra.mxu0 %v76
  %135 = vmatpush.msra.mxu0 %v73
  %136 = vmatmul.f32.gmra.mxu0 %v23
  %v137 = vpop.f32.mrf.mxu0
  %v138 = vadd.f32 0.0, %v137
  %139 = vmatmul.f32.gmra.mxu0 %v24
  %v140 = vpop.f32.mrf.mxu0
  %v141 = vadd.f32 0.0, %v140
  %142 = vmatmul.f32.gmra.mxu0 %v25
  %v143 = vpop.f32.mrf.mxu0
  %v144 = vadd.f32 0.0, %v143
  %145 = vmatmul.f32.gmra.mxu0 %v26
  %v146 = vpop.f32.mrf.mxu0
  %v147 = vadd.f32 0.0, %v146
  %148 = vmatmul.f32.gmra.mxu0 %v27
  %v149 = vpop.f32.mrf.mxu0
  %v150 = vadd.f32 0.0, %v149
  %151 = vmatmul.f32.gmra.mxu0 %v28
  %v152 = vpop.f32.mrf.mxu0
  %v153 = vadd.f32 0.0, %v152
  %154 = vmatmul.f32.gmra.mxu0 %v29
  %v155 = vpop.f32.mrf.mxu0
  %v156 = vadd.f32 0.0, %v155
  %157 = vmatmul.f32.gmra.mxu0 %v30
  %v158 = vpop.f32.mrf.mxu0
  %v159 = vadd.f32 0.0, %v158
  %160 = vmatmul.f32.gmra.mxu0 %v31
  %v161 = vpop.f32.mrf.mxu0
  %v162 = vadd.f32 0.0, %v161
  %163 = vmatmul.f32.gmra.mxu0 %v32
  %v164 = vpop.f32.mrf.mxu0
  %v165 = vadd.f32 0.0, %v164
  %166 = vmatmul.f32.gmra.mxu0 %v33
  %v167 = vpop.f32.mrf.mxu0
  %v168 = vadd.f32 0.0, %v167
  %169 = vmatmul.f32.gmra.mxu0 %v34
  %v170 = vpop.f32.mrf.mxu0
  %v171 = vadd.f32 0.0, %v170
  %172 = vmatmul.f32.gmra.mxu0 %v35
  %v173 = vpop.f32.mrf.mxu0
  %v174 = vadd.f32 0.0, %v173
  %175 = vmatmul.f32.gmra.mxu0 %v36
  %v176 = vpop.f32.mrf.mxu0
  %v177 = vadd.f32 0.0, %v176
  %178 = vmatmul.f32.gmra.mxu0 %v37
  %v179 = vpop.f32.mrf.mxu0
  %v180 = vadd.f32 0.0, %v179
  %181 = vmatmul.f32.gmra.mxu0 %v38
  %v182 = vpop.f32.mrf.mxu0
  %v183 = vadd.f32 0.0, %v182
  %184 = vdwg.mxu0
  %v185 = vmul.f32 %v138, 2.0
  %v186 = vmul.f32 %v141, 2.0
  %v187 = vmul.f32 %v144, 2.0
  %v188 = vmul.f32 %v147, 2.0
  %v189 = vmul.f32 %v150, 2.0
  %v190 = vmul.f32 %v153, 2.0
  %v191 = vmul.f32 %v156, 2.0
  %v192 = vmul.f32 %v159, 2.0
  %v193 = vmul.f32 %v162, 2.0
  %v194 = vmul.f32 %v165, 2.0
  %v195 = vmul.f32 %v168, 2.0
  %v196 = vmul.f32 %v171, 2.0
  %v197 = vmul.f32 %v174, 2.0
  %v198 = vmul.f32 %v177, 2.0
  %v199 = vmul.f32 %v180, 2.0
  %v200 = vmul.f32 %v183, 2.0
  %v201 = vsub.f32 %v185, %v39
  %v202 = vsub.f32 %v186, %v40
  %v203 = vsub.f32 %v187, %v41
  %v204 = vsub.f32 %v188, %v42
  %v205 = vsub.f32 %v189, %v43
  %v206 = vsub.f32 %v190, %v44
  %v207 = vsub.f32 %v191, %v45
  %v208 = vsub.f32 %v192, %v46
  %v209 = vsub.f32 %v193, %v47
  %v210 = vsub.f32 %v194, %v48
  %v211 = vsub.f32 %v195, %v49
  %v212 = vsub.f32 %v196, %v50
  %v213 = vsub.f32 %v197, %v51
  %v214 = vsub.f32 %v198, %v52
  %v215 = vsub.f32 %v199, %v53
  %v216 = vsub.f32 %v200, %v54
  %217 = vmatpush.msra.mxu0 %v216
  %218 = vmatpush.msra.mxu0 %v215
  %219 = vmatpush.msra.mxu0 %v214
  %220 = vmatpush.msra.mxu0 %v213
  %221 = vmatpush.msra.mxu0 %v212
  %222 = vmatpush.msra.mxu0 %v211
  %223 = vmatpush.msra.mxu0 %v210
  %224 = vmatpush.msra.mxu0 %v209
  %225 = vmatpush.msra.mxu0 %v208
  %226 = vmatpush.msra.mxu0 %v207
  %227 = vmatpush.msra.mxu0 %v206
  %228 = vmatpush.msra.mxu0 %v205
  %229 = vmatpush.msra.mxu0 %v204
  %230 = vmatpush.msra.mxu0 %v203
  %231 = vmatpush.msra.mxu0 %v202
  %232 = vmatpush.msra.mxu0 %v201
  %233 = vmatmul.f32.gmra.mxu0 %v23
  %v234 = vpop.f32.mrf.mxu0
  %v235 = vadd.f32 0.0, %v234
  %236 = vmatmul.f32.gmra.mxu0 %v24
  %v237 = vpop.f32.mrf.mxu0
  %v238 = vadd.f32 0.0, %v237
  %239 = vmatmul.f32.gmra.mxu0 %v25
  %v240 = vpop.f32.mrf.mxu0
  %241 = vmatmul.f32.gmra.mxu0 %v26
  %v242 = vpop.f32.mrf.mxu0
  %243 = vmatmul.f32.gmra.mxu0 %v27
  %v244 = vpop.f32.mrf.mxu0
  %245 = vmatmul.f32.gmra.mxu0 %v28
  %v246 = vpop.f32.mrf.mxu0
  %247 = vmatmul.f32.gmra.mxu0 %v29
  %v248 = vpop.f32.mrf.mxu0
  %249 = vmatmul.f32.gmra.mxu0 %v30
  %v250 = vpop.f32.mrf.mxu0
  %251 = vmatmul.f32.gmra.mxu0 %v31
  %v252 = vpop.f32.mrf.mxu0
  %253 = vmatmul.f32.gmra.mxu0 %v32
  %v254 = vpop.f32.mrf.mxu0
  %255 = vmatmul.f32.gmra.mxu0 %v33
  %v256 = vpop.f32.mrf.mxu0
  %257 = vmatmul.f32.gmra.mxu0 %v34
  %v258 = vpop.f32.mrf.mxu0
  %259 = vmatmul.f32.gmra.mxu0 %v35
  %v260 = vpop.f32.mrf.mxu0
  %261 = vmatmul.f32.gmra.mxu0 %v36
  %v262 = vpop.f32.mrf.mxu0
  %263 = vmatmul.f32.gmra.mxu0 %v37
  %v264 = vpop.f32.mrf.mxu0
  %265 = vmatmul.f32.gmra.mxu0 %v38
  %v266 = vpop.f32.mrf.mxu0
  %267 = vdwg.mxu0
  %v268 = vmul.f32 %v235, 2.0
  %v269 = vmul.f32 %v238, 2.0
  %v270 = vsub.f32 %v268, %v73
  %v271 = vsub.f32 %v269, %v76
  %v272 = vld [vmem:[%s2] sm:$0xff]
  %v273 = vld [vmem:[%s2 + $0x8] sm:$0xff]
  %v274 = vld [vmem:[%s2 + $0x10] sm:$0xff]
  %v275 = vld [vmem:[%s2 + $0x18] sm:$0xff]
  %v276 = vld [vmem:[%s3] sm:$0xff]
  %v277 = vld [vmem:[%s3 + $0x8] sm:$0xff]
  %v278 = vld [vmem:[%s3 + $0x10] sm:$0xff]
  %v279 = vld [vmem:[%s3 + $0x18] sm:$0xff]
  %281 = vset.pattern.permute.xlu0 0
  %282 = vperm.xlu0 %281, %v276
  %v283 = vpop.permute.xlu0 %282
  %285 = vset.pattern.permute.xlu0 0
  %286 = vperm.xlu0 %285, %v277
  %v287 = vpop.permute.xlu0 %286
  %289 = vset.pattern.permute.xlu0 0
  %290 = vperm.xlu0 %289, %v278
  %v291 = vpop.permute.xlu0 %290
  %293 = vset.pattern.permute.xlu0 0
  %294 = vperm.xlu0 %293, %v279
  %v295 = vpop.permute.xlu0 %294
  %v296 = vld [vmem:[%s5] sm:$0xff]
  %v297 = vld [vmem:[%s5 + $0x8] sm:$0x3]
  %299 = vset.pattern.permute.xlu0 0
  %300 = vperm.xlu0 %299, %v296
  %v301 = vpop.permute.xlu0 %300
  %304 = vset.pattern.permute.xlu0 0
  %305 = vperm.xlu0 %304, %v297
  %v306 = vpop.permute.xlu0 %305
  %v308 = vld [vmem:[%s4] sm:$0xff]
  %v309 = vld [vmem:[%s4 + $0x8] sm:$0x3]
  %v314 = vrot.slane %v272, 1
  %v315 = vrot.slane %v272, 2
  %v316 = vrot.slane %v272, 3
  %v317 = vrot.slane %v272, 4
  %v318 = vrot.slane %v272, 5
  %v319 = vrot.slane %v272, 6
  %v320 = vrot.slane %v272, 7
  %v321 = vrot.slane %v273, 1
  %v322 = vrot.slane %v273, 2
  %v323 = vrot.slane %v273, 3
  %v324 = vrot.slane %v273, 4
  %v325 = vrot.slane %v273, 5
  %v326 = vrot.slane %v273, 6
  %v327 = vrot.slane %v273, 7
  %v328 = vrot.slane %v274, 1
  %v329 = vrot.slane %v274, 2
  %v330 = vrot.slane %v274, 3
  %v331 = vrot.slane %v274, 4
  %v332 = vrot.slane %v274, 5
  %v333 = vrot.slane %v274, 6
  %v334 = vrot.slane %v274, 7
  %v335 = vrot.slane %v275, 1
  %v336 = vrot.slane %v275, 2
  %v337 = vrot.slane %v275, 3
  %v338 = vrot.slane %v275, 4
  %v339 = vrot.slane %v275, 5
  %v340 = vrot.slane %v275, 6
  %v341 = vrot.slane %v275, 7
  %v342 = vperm.slane %v272, 0
  %v343 = vperm.slane %v314, 0
  %v344 = vperm.slane %v315, 0
  %v345 = vperm.slane %v316, 0
  %v346 = vperm.slane %v317, 0
  %v347 = vperm.slane %v318, 0
  %v348 = vperm.slane %v319, 0
  %v349 = vperm.slane %v320, 0
  %v350 = vperm.slane %v273, 0
  %v351 = vperm.slane %v321, 0
  %v352 = vperm.slane %v322, 0
  %v353 = vperm.slane %v323, 0
  %v354 = vperm.slane %v324, 0
  %v355 = vperm.slane %v325, 0
  %v356 = vperm.slane %v326, 0
  %v357 = vperm.slane %v327, 0
  %v358 = vperm.slane %v274, 0
  %v359 = vperm.slane %v328, 0
  %v360 = vperm.slane %v329, 0
  %v361 = vperm.slane %v330, 0
  %v362 = vperm.slane %v331, 0
  %v363 = vperm.slane %v332, 0
  %v364 = vperm.slane %v333, 0
  %v365 = vperm.slane %v334, 0
  %v366 = vperm.slane %v275, 0
  %v367 = vperm.slane %v335, 0
  %v368 = vperm.slane %v336, 0
  %v369 = vperm.slane %v337, 0
  %v370 = vperm.slane %v338, 0
  %v371 = vperm.slane %v339, 0
  %v372 = vperm.slane %v340, 0
  %v373 = vperm.slane %v341, 0
  %374 = vset.pattern.permute.xlu0 0
  %375 = vperm.xlu0 %374, %v342
  %v376 = vpop.permute.xlu0 %375
  %378 = vset.pattern.permute.xlu0 0
  %379 = vperm.xlu0 %378, %v343
  %v380 = vpop.permute.xlu0 %379
  %382 = vset.pattern.permute.xlu0 0
  %383 = vperm.xlu0 %382, %v344
  %v384 = vpop.permute.xlu0 %383
  %386 = vset.pattern.permute.xlu0 0
  %387 = vperm.xlu0 %386, %v345
  %v388 = vpop.permute.xlu0 %387
  %390 = vset.pattern.permute.xlu0 0
  %391 = vperm.xlu0 %390, %v346
  %v392 = vpop.permute.xlu0 %391
  %394 = vset.pattern.permute.xlu0 0
  %395 = vperm.xlu0 %394, %v347
  %v396 = vpop.permute.xlu0 %395
  %398 = vset.pattern.permute.xlu0 0
  %399 = vperm.xlu0 %398, %v348
  %v400 = vpop.permute.xlu0 %399
  %402 = vset.pattern.permute.xlu0 0
  %403 = vperm.xlu0 %402, %v349
  %v404 = vpop.permute.xlu0 %403
  %406 = vset.pattern.permute.xlu0 0
  %407 = vperm.xlu0 %406, %v350
  %v408 = vpop.permute.xlu0 %407
  %410 = vset.pattern.permute.xlu0 0
  %411 = vperm.xlu0 %410, %v351
  %v412 = vpop.permute.xlu0 %411
  %414 = vset.pattern.permute.xlu0 0
  %415 = vperm.xlu0 %414, %v352
  %v416 = vpop.permute.xlu0 %415
  %418 = vset.pattern.permute.xlu0 0
  %419 = vperm.xlu0 %418, %v353
  %v420 = vpop.permute.xlu0 %419
  %422 = vset.pattern.permute.xlu0 0
  %423 = vperm.xlu0 %422, %v354
  %v424 = vpop.permute.xlu0 %423
  %426 = vset.pattern.permute.xlu0 0
  %427 = vperm.xlu0 %426, %v355
  %v428 = vpop.permute.xlu0 %427
  %430 = vset.pattern.permute.xlu0 0
  %431 = vperm.xlu0 %430, %v356
  %v432 = vpop.permute.xlu0 %431
  %434 = vset.pattern.permute.xlu0 0
  %435 = vperm.xlu0 %434, %v357
  %v436 = vpop.permute.xlu0 %435
  %438 = vset.pattern.permute.xlu0 0
  %439 = vperm.xlu0 %438, %v358
  %v440 = vpop.permute.xlu0 %439
  %442 = vset.pattern.permute.xlu0 0
  %443 = vperm.xlu0 %442, %v359
  %v444 = vpop.permute.xlu0 %443
  %446 = vset.pattern.permute.xlu0 0
  %447 = vperm.xlu0 %446, %v360
  %v448 = vpop.permute.xlu0 %447
  %450 = vset.pattern.permute.xlu0 0
  %451 = vperm.xlu0 %450, %v361
  %v452 = vpop.permute.xlu0 %451
  %454 = vset.pattern.permute.xlu0 0
  %455 = vperm.xlu0 %454, %v362
  %v456 = vpop.permute.xlu0 %455
  %458 = vset.pattern.permute.xlu0 0
  %459 = vperm.xlu0 %458, %v363
  %v460 = vpop.permute.xlu0 %459
  %462 = vset.pattern.permute.xlu0 0
  %463 = vperm.xlu0 %462, %v364
  %v464 = vpop.permute.xlu0 %463
  %466 = vset.pattern.permute.xlu0 0
  %467 = vperm.xlu0 %466, %v365
  %v468 = vpop.permute.xlu0 %467
  %470 = vset.pattern.permute.xlu0 0
  %471 = vperm.xlu0 %470, %v366
  %v472 = vpop.permute.xlu0 %471
  %474 = vset.pattern.permute.xlu0 0
  %475 = vperm.xlu0 %474, %v367
  %v476 = vpop.permute.xlu0 %475
  %478 = vset.pattern.permute.xlu0 0
  %479 = vperm.xlu0 %478, %v368
  %v480 = vpop.permute.xlu0 %479
  %482 = vset.pattern.permute.xlu0 0
  %483 = vperm.xlu0 %482, %v369
  %v484 = vpop.permute.xlu0 %483
  %486 = vset.pattern.permute.xlu0 0
  %487 = vperm.xlu0 %486, %v370
  %v488 = vpop.permute.xlu0 %487
  %490 = vset.pattern.permute.xlu0 0
  %491 = vperm.xlu0 %490, %v371
  %v492 = vpop.permute.xlu0 %491
  %494 = vset.pattern.permute.xlu0 0
  %495 = vperm.xlu0 %494, %v372
  %v496 = vpop.permute.xlu0 %495
  %498 = vset.pattern.permute.xlu0 0
  %499 = vperm.xlu0 %498, %v373
  %v500 = vpop.permute.xlu0 %499
  %502 = vset.pattern.permute.xlu0 1
  %503 = vperm.xlu0 %502, %v342
  %v504 = vpop.permute.xlu0 %503
  %506 = vset.pattern.permute.xlu0 1
  %507 = vperm.xlu0 %506, %v343
  %v508 = vpop.permute.xlu0 %507
  %510 = vset.pattern.permute.xlu0 1
  %511 = vperm.xlu0 %510, %v344
  %v512 = vpop.permute.xlu0 %511
  %514 = vset.pattern.permute.xlu0 1
  %515 = vperm.xlu0 %514, %v345
  %v516 = vpop.permute.xlu0 %515
  %518 = vset.pattern.permute.xlu0 1
  %519 = vperm.xlu0 %518, %v346
  %v520 = vpop.permute.xlu0 %519
  %522 = vset.pattern.permute.xlu0 1
  %523 = vperm.xlu0 %522, %v347
  %v524 = vpop.permute.xlu0 %523
  %526 = vset.pattern.permute.xlu0 1
  %527 = vperm.xlu0 %526, %v348
  %v528 = vpop.permute.xlu0 %527
  %530 = vset.pattern.permute.xlu0 1
  %531 = vperm.xlu0 %530, %v349
  %v532 = vpop.permute.xlu0 %531
  %534 = vset.pattern.permute.xlu0 1
  %535 = vperm.xlu0 %534, %v350
  %v536 = vpop.permute.xlu0 %535
  %538 = vset.pattern.permute.xlu0 1
  %539 = vperm.xlu0 %538, %v351
  %v540 = vpop.permute.xlu0 %539
  %542 = vset.pattern.permute.xlu0 1
  %543 = vperm.xlu0 %542, %v352
  %v544 = vpop.permute.xlu0 %543
  %546 = vset.pattern.permute.xlu0 1
  %547 = vperm.xlu0 %546, %v353
  %v548 = vpop.permute.xlu0 %547
  %550 = vset.pattern.permute.xlu0 1
  %551 = vperm.xlu0 %550, %v354
  %v552 = vpop.permute.xlu0 %551
  %554 = vset.pattern.permute.xlu0 1
  %555 = vperm.xlu0 %554, %v355
  %v556 = vpop.permute.xlu0 %555
  %558 = vset.pattern.permute.xlu0 1
  %559 = vperm.xlu0 %558, %v356
  %v560 = vpop.permute.xlu0 %559
  %562 = vset.pattern.permute.xlu0 1
  %563 = vperm.xlu0 %562, %v357
  %v564 = vpop.permute.xlu0 %563
  %566 = vset.pattern.permute.xlu0 1
  %567 = vperm.xlu0 %566, %v358
  %v568 = vpop.permute.xlu0 %567
  %570 = vset.pattern.permute.xlu0 1
  %571 = vperm.xlu0 %570, %v359
  %v572 = vpop.permute.xlu0 %571
  %574 = vset.pattern.permute.xlu0 1
  %575 = vperm.xlu0 %574, %v360
  %v576 = vpop.permute.xlu0 %575
  %578 = vset.pattern.permute.xlu0 1
  %579 = vperm.xlu0 %578, %v361
  %v580 = vpop.permute.xlu0 %579
  %582 = vset.pattern.permute.xlu0 1
  %583 = vperm.xlu0 %582, %v362
  %v584 = vpop.permute.xlu0 %583
  %586 = vset.pattern.permute.xlu0 1
  %587 = vperm.xlu0 %586, %v363
  %v588 = vpop.permute.xlu0 %587
  %590 = vset.pattern.permute.xlu0 1
  %591 = vperm.xlu0 %590, %v364
  %v592 = vpop.permute.xlu0 %591
  %594 = vset.pattern.permute.xlu0 1
  %595 = vperm.xlu0 %594, %v365
  %v596 = vpop.permute.xlu0 %595
  %598 = vset.pattern.permute.xlu0 1
  %599 = vperm.xlu0 %598, %v366
  %v600 = vpop.permute.xlu0 %599
  %602 = vset.pattern.permute.xlu0 1
  %603 = vperm.xlu0 %602, %v367
  %v604 = vpop.permute.xlu0 %603
  %606 = vset.pattern.permute.xlu0 1
  %607 = vperm.xlu0 %606, %v368
  %v608 = vpop.permute.xlu0 %607
  %610 = vset.pattern.permute.xlu0 1
  %611 = vperm.xlu0 %610, %v369
  %v612 = vpop.permute.xlu0 %611
  %614 = vset.pattern.permute.xlu0 1
  %615 = vperm.xlu0 %614, %v370
  %v616 = vpop.permute.xlu0 %615
  %618 = vset.pattern.permute.xlu0 1
  %619 = vperm.xlu0 %618, %v371
  %v620 = vpop.permute.xlu0 %619
  %622 = vset.pattern.permute.xlu0 1
  %623 = vperm.xlu0 %622, %v372
  %v624 = vpop.permute.xlu0 %623
  %626 = vset.pattern.permute.xlu0 1
  %627 = vperm.xlu0 %626, %v373
  %v628 = vpop.permute.xlu0 %627
  %630 = vset.pattern.permute.xlu0 2
  %631 = vperm.xlu0 %630, %v342
  %v632 = vpop.permute.xlu0 %631
  %634 = vset.pattern.permute.xlu0 2
  %635 = vperm.xlu0 %634, %v343
  %v636 = vpop.permute.xlu0 %635
  %638 = vset.pattern.permute.xlu0 2
  %639 = vperm.xlu0 %638, %v344
  %v640 = vpop.permute.xlu0 %639
  %642 = vset.pattern.permute.xlu0 2
  %643 = vperm.xlu0 %642, %v345
  %v644 = vpop.permute.xlu0 %643
  %646 = vset.pattern.permute.xlu0 2
  %647 = vperm.xlu0 %646, %v346
  %v648 = vpop.permute.xlu0 %647
  %650 = vset.pattern.permute.xlu0 2
  %651 = vperm.xlu0 %650, %v347
  %v652 = vpop.permute.xlu0 %651
  %654 = vset.pattern.permute.xlu0 2
  %655 = vperm.xlu0 %654, %v348
  %v656 = vpop.permute.xlu0 %655
  %658 = vset.pattern.permute.xlu0 2
  %659 = vperm.xlu0 %658, %v349
  %v660 = vpop.permute.xlu0 %659
  %662 = vset.pattern.permute.xlu0 2
  %663 = vperm.xlu0 %662, %v350
  %v664 = vpop.permute.xlu0 %663
  %666 = vset.pattern.permute.xlu0 2
  %667 = vperm.xlu0 %666, %v351
  %v668 = vpop.permute.xlu0 %667
  %670 = vset.pattern.permute.xlu0 2
  %671 = vperm.xlu0 %670, %v352
  %v672 = vpop.permute.xlu0 %671
  %674 = vset.pattern.permute.xlu0 2
  %675 = vperm.xlu0 %674, %v353
  %v676 = vpop.permute.xlu0 %675
  %678 = vset.pattern.permute.xlu0 2
  %679 = vperm.xlu0 %678, %v354
  %v680 = vpop.permute.xlu0 %679
  %682 = vset.pattern.permute.xlu0 2
  %683 = vperm.xlu0 %682, %v355
  %v684 = vpop.permute.xlu0 %683
  %686 = vset.pattern.permute.xlu0 2
  %687 = vperm.xlu0 %686, %v356
  %v688 = vpop.permute.xlu0 %687
  %690 = vset.pattern.permute.xlu0 2
  %691 = vperm.xlu0 %690, %v357
  %v692 = vpop.permute.xlu0 %691
  %694 = vset.pattern.permute.xlu0 2
  %695 = vperm.xlu0 %694, %v358
  %v696 = vpop.permute.xlu0 %695
  %698 = vset.pattern.permute.xlu0 2
  %699 = vperm.xlu0 %698, %v359
  %v700 = vpop.permute.xlu0 %699
  %702 = vset.pattern.permute.xlu0 2
  %703 = vperm.xlu0 %702, %v360
  %v704 = vpop.permute.xlu0 %703
  %706 = vset.pattern.permute.xlu0 2
  %707 = vperm.xlu0 %706, %v361
  %v708 = vpop.permute.xlu0 %707
  %710 = vset.pattern.permute.xlu0 2
  %711 = vperm.xlu0 %710, %v362
  %v712 = vpop.permute.xlu0 %711
  %714 = vset.pattern.permute.xlu0 2
  %715 = vperm.xlu0 %714, %v363
  %v716 = vpop.permute.xlu0 %715
  %718 = vset.pattern.permute.xlu0 2
  %719 = vperm.xlu0 %718, %v364
  %v720 = vpop.permute.xlu0 %719
  %722 = vset.pattern.permute.xlu0 2
  %723 = vperm.xlu0 %722, %v365
  %v724 = vpop.permute.xlu0 %723
  %726 = vset.pattern.permute.xlu0 2
  %727 = vperm.xlu0 %726, %v366
  %v728 = vpop.permute.xlu0 %727
  %730 = vset.pattern.permute.xlu0 2
  %731 = vperm.xlu0 %730, %v367
  %v732 = vpop.permute.xlu0 %731
  %734 = vset.pattern.permute.xlu0 2
  %735 = vperm.xlu0 %734, %v368
  %v736 = vpop.permute.xlu0 %735
  %738 = vset.pattern.permute.xlu0 2
  %739 = vperm.xlu0 %738, %v369
  %v740 = vpop.permute.xlu0 %739
  %742 = vset.pattern.permute.xlu0 2
  %743 = vperm.xlu0 %742, %v370
  %v744 = vpop.permute.xlu0 %743
  %746 = vset.pattern.permute.xlu0 2
  %747 = vperm.xlu0 %746, %v371
  %v748 = vpop.permute.xlu0 %747
  %750 = vset.pattern.permute.xlu0 2
  %751 = vperm.xlu0 %750, %v372
  %v752 = vpop.permute.xlu0 %751
  %754 = vset.pattern.permute.xlu0 2
  %755 = vperm.xlu0 %754, %v373
  %v756 = vpop.permute.xlu0 %755
  %758 = vset.pattern.permute.xlu0 3
  %759 = vperm.xlu0 %758, %v342
  %v760 = vpop.permute.xlu0 %759
  %762 = vset.pattern.permute.xlu0 3
  %763 = vperm.xlu0 %762, %v343
  %v764 = vpop.permute.xlu0 %763
  %766 = vset.pattern.permute.xlu0 3
  %767 = vperm.xlu0 %766, %v344
  %v768 = vpop.permute.xlu0 %767
  %770 = vset.pattern.permute.xlu0 3
  %771 = vperm.xlu0 %770, %v345
  %v772 = vpop.permute.xlu0 %771
  %774 = vset.pattern.permute.xlu0 3
  %775 = vperm.xlu0 %774, %v346
  %v776 = vpop.permute.xlu0 %775
  %778 = vset.pattern.permute.xlu0 3
  %779 = vperm.xlu0 %778, %v347
  %v780 = vpop.permute.xlu0 %779
  %782 = vset.pattern.permute.xlu0 3
  %783 = vperm.xlu0 %782, %v348
  %v784 = vpop.permute.xlu0 %783
  %786 = vset.pattern.permute.xlu0 3
  %787 = vperm.xlu0 %786, %v349
  %v788 = vpop.permute.xlu0 %787
  %790 = vset.pattern.permute.xlu0 3
  %791 = vperm.xlu0 %790, %v350
  %v792 = vpop.permute.xlu0 %791
  %794 = vset.pattern.permute.xlu0 3
  %795 = vperm.xlu0 %794, %v351
  %v796 = vpop.permute.xlu0 %795
  %798 = vset.pattern.permute.xlu0 3
  %799 = vperm.xlu0 %798, %v352
  %v800 = vpop.permute.xlu0 %799
  %802 = vset.pattern.permute.xlu0 3
  %803 = vperm.xlu0 %802, %v353
  %v804 = vpop.permute.xlu0 %803
  %806 = vset.pattern.permute.xlu0 3
  %807 = vperm.xlu0 %806, %v354
  %v808 = vpop.permute.xlu0 %807
  %810 = vset.pattern.permute.xlu0 3
  %811 = vperm.xlu0 %810, %v355
  %v812 = vpop.permute.xlu0 %811
  %814 = vset.pattern.permute.xlu0 3
  %815 = vperm.xlu0 %814, %v356
  %v816 = vpop.permute.xlu0 %815
  %818 = vset.pattern.permute.xlu0 3
  %819 = vperm.xlu0 %818, %v357
  %v820 = vpop.permute.xlu0 %819
  %822 = vset.pattern.permute.xlu0 3
  %823 = vperm.xlu0 %822, %v358
  %v824 = vpop.permute.xlu0 %823
  %826 = vset.pattern.permute.xlu0 3
  %827 = vperm.xlu0 %826, %v359
  %v828 = vpop.permute.xlu0 %827
  %830 = vset.pattern.permute.xlu0 3
  %831 = vperm.xlu0 %830, %v360
  %v832 = vpop.permute.xlu0 %831
  %834 = vset.pattern.permute.xlu0 3
  %835 = vperm.xlu0 %834, %v361
  %v836 = vpop.permute.xlu0 %835
  %838 = vset.pattern.permute.xlu0 3
  %839 = vperm.xlu0 %838, %v362
  %v840 = vpop.permute.xlu0 %839
  %842 = vset.pattern.permute.xlu0 3
  %843 = vperm.xlu0 %842, %v363
  %v844 = vpop.permute.xlu0 %843
  %846 = vset.pattern.permute.xlu0 3
  %847 = vperm.xlu0 %846, %v364
  %v848 = vpop.permute.xlu0 %847
  %850 = vset.pattern.permute.xlu0 3
  %851 = vperm.xlu0 %850, %v365
  %v852 = vpop.permute.xlu0 %851
  %854 = vset.pattern.permute.xlu0 3
  %855 = vperm.xlu0 %854, %v366
  %v856 = vpop.permute.xlu0 %855
  %858 = vset.pattern.permute.xlu0 3
  %859 = vperm.xlu0 %858, %v367
  %v860 = vpop.permute.xlu0 %859
  %862 = vset.pattern.permute.xlu0 3
  %863 = vperm.xlu0 %862, %v368
  %v864 = vpop.permute.xlu0 %863
  %866 = vset.pattern.permute.xlu0 3
  %867 = vperm.xlu0 %866, %v369
  %v868 = vpop.permute.xlu0 %867
  %870 = vset.pattern.permute.xlu0 3
  %871 = vperm.xlu0 %870, %v370
  %v872 = vpop.permute.xlu0 %871
  %874 = vset.pattern.permute.xlu0 3
  %875 = vperm.xlu0 %874, %v371
  %v876 = vpop.permute.xlu0 %875
  %878 = vset.pattern.permute.xlu0 3
  %879 = vperm.xlu0 %878, %v372
  %v880 = vpop.permute.xlu0 %879
  %882 = vset.pattern.permute.xlu0 3
  %883 = vperm.xlu0 %882, %v373
  %v884 = vpop.permute.xlu0 %883
  %v886 = vmul.f32 %v376, %v39
  %v887 = vmul.f32 %v380, %v39
  %v888 = vmul.f32 %v384, %v39
  %v889 = vmul.f32 %v388, %v39
  %v890 = vmul.f32 %v392, %v39
  %v891 = vmul.f32 %v396, %v39
  %v892 = vmul.f32 %v400, %v39
  %v893 = vmul.f32 %v404, %v39
  %v894 = vmul.f32 %v408, %v39
  %v895 = vmul.f32 %v412, %v39
  %v896 = vmul.f32 %v416, %v39
  %v897 = vmul.f32 %v420, %v39
  %v898 = vmul.f32 %v424, %v39
  %v899 = vmul.f32 %v428, %v39
  %v900 = vmul.f32 %v432, %v39
  %v901 = vmul.f32 %v436, %v39
  %v902 = vmul.f32 %v440, %v39
  %v903 = vmul.f32 %v444, %v39
  %v904 = vmul.f32 %v448, %v39
  %v905 = vmul.f32 %v452, %v39
  %v906 = vmul.f32 %v456, %v39
  %v907 = vmul.f32 %v460, %v39
  %v908 = vmul.f32 %v464, %v39
  %v909 = vmul.f32 %v468, %v39
  %v910 = vmul.f32 %v472, %v39
  %v911 = vmul.f32 %v476, %v39
  %v912 = vmul.f32 %v480, %v39
  %v913 = vmul.f32 %v484, %v39
  %v914 = vmul.f32 %v488, %v39
  %v915 = vmul.f32 %v492, %v39
  %v916 = vmul.f32 %v496, %v39
  %v917 = vmul.f32 %v500, %v39
  %v918 = vmul.f32 %v504, %v73
  %v919 = vmul.f32 %v508, %v73
  %v920 = vmul.f32 %v512, %v73
  %v921 = vmul.f32 %v516, %v73
  %v922 = vmul.f32 %v520, %v73
  %v923 = vmul.f32 %v524, %v73
  %v924 = vmul.f32 %v528, %v73
  %v925 = vmul.f32 %v532, %v73
  %v926 = vmul.f32 %v536, %v73
  %v927 = vmul.f32 %v540, %v73
  %v928 = vmul.f32 %v544, %v73
  %v929 = vmul.f32 %v548, %v73
  %v930 = vmul.f32 %v552, %v73
  %v931 = vmul.f32 %v556, %v73
  %v932 = vmul.f32 %v560, %v73
  %v933 = vmul.f32 %v564, %v73
  %v934 = vmul.f32 %v568, %v73
  %v935 = vmul.f32 %v572, %v73
  %v936 = vmul.f32 %v576, %v73
  %v937 = vmul.f32 %v580, %v73
  %v938 = vmul.f32 %v584, %v73
  %v939 = vmul.f32 %v588, %v73
  %v940 = vmul.f32 %v592, %v73
  %v941 = vmul.f32 %v596, %v73
  %v942 = vmul.f32 %v600, %v73
  %v943 = vmul.f32 %v604, %v73
  %v944 = vmul.f32 %v608, %v73
  %v945 = vmul.f32 %v612, %v73
  %v946 = vmul.f32 %v616, %v73
  %v947 = vmul.f32 %v620, %v73
  %v948 = vmul.f32 %v624, %v73
  %v949 = vmul.f32 %v628, %v73
  %v950 = vadd.f32 %v886, %v918
  %v951 = vadd.f32 %v887, %v919
  %v952 = vadd.f32 %v888, %v920
  %v953 = vadd.f32 %v889, %v921
  %v954 = vadd.f32 %v890, %v922
  %v955 = vadd.f32 %v891, %v923
  %v956 = vadd.f32 %v892, %v924
  %v957 = vadd.f32 %v893, %v925
  %v958 = vadd.f32 %v894, %v926
  %v959 = vadd.f32 %v895, %v927
  %v960 = vadd.f32 %v896, %v928
  %v961 = vadd.f32 %v897, %v929
  %v962 = vadd.f32 %v898, %v930
  %v963 = vadd.f32 %v899, %v931
  %v964 = vadd.f32 %v900, %v932
  %v965 = vadd.f32 %v901, %v933
  %v966 = vadd.f32 %v902, %v934
  %v967 = vadd.f32 %v903, %v935
  %v968 = vadd.f32 %v904, %v936
  %v969 = vadd.f32 %v905, %v937
  %v970 = vadd.f32 %v906, %v938
  %v971 = vadd.f32 %v907, %v939
  %v972 = vadd.f32 %v908, %v940
  %v973 = vadd.f32 %v909, %v941
  %v974 = vadd.f32 %v910, %v942
  %v975 = vadd.f32 %v911, %v943
  %v976 = vadd.f32 %v912, %v944
  %v977 = vadd.f32 %v913, %v945
  %v978 = vadd.f32 %v914, %v946
  %v979 = vadd.f32 %v915, %v947
  %v980 = vadd.f32 %v916, %v948
  %v981 = vadd.f32 %v917, %v949
  %v982 = vmul.f32 %v632, %v201
  %v983 = vmul.f32 %v636, %v201
  %v984 = vmul.f32 %v640, %v201
  %v985 = vmul.f32 %v644, %v201
  %v986 = vmul.f32 %v648, %v201
  %v987 = vmul.f32 %v652, %v201
  %v988 = vmul.f32 %v656, %v201
  %v989 = vmul.f32 %v660, %v201
  %v990 = vmul.f32 %v664, %v201
  %v991 = vmul.f32 %v668, %v201
  %v992 = vmul.f32 %v672, %v201
  %v993 = vmul.f32 %v676, %v201
  %v994 = vmul.f32 %v680, %v201
  %v995 = vmul.f32 %v684, %v201
  %v996 = vmul.f32 %v688, %v201
  %v997 = vmul.f32 %v692, %v201
  %v998 = vmul.f32 %v696, %v201
  %v999 = vmul.f32 %v700, %v201
  %v1000 = vmul.f32 %v704, %v201
  %v1001 = vmul.f32 %v708, %v201
  %v1002 = vmul.f32 %v712, %v201
  %v1003 = vmul.f32 %v716, %v201
  %v1004 = vmul.f32 %v720, %v201
  %v1005 = vmul.f32 %v724, %v201
  %v1006 = vmul.f32 %v728, %v201
  %v1007 = vmul.f32 %v732, %v201
  %v1008 = vmul.f32 %v736, %v201
  %v1009 = vmul.f32 %v740, %v201
  %v1010 = vmul.f32 %v744, %v201
  %v1011 = vmul.f32 %v748, %v201
  %v1012 = vmul.f32 %v752, %v201
  %v1013 = vmul.f32 %v756, %v201
  %v1014 = vadd.f32 %v950, %v982
  %v1015 = vadd.f32 %v951, %v983
  %v1016 = vadd.f32 %v952, %v984
  %v1017 = vadd.f32 %v953, %v985
  %v1018 = vadd.f32 %v954, %v986
  %v1019 = vadd.f32 %v955, %v987
  %v1020 = vadd.f32 %v956, %v988
  %v1021 = vadd.f32 %v957, %v989
  %v1022 = vadd.f32 %v958, %v990
  %v1023 = vadd.f32 %v959, %v991
  %v1024 = vadd.f32 %v960, %v992
  %v1025 = vadd.f32 %v961, %v993
  %v1026 = vadd.f32 %v962, %v994
  %v1027 = vadd.f32 %v963, %v995
  %v1028 = vadd.f32 %v964, %v996
  %v1029 = vadd.f32 %v965, %v997
  %v1030 = vadd.f32 %v966, %v998
  %v1031 = vadd.f32 %v967, %v999
  %v1032 = vadd.f32 %v968, %v1000
  %v1033 = vadd.f32 %v969, %v1001
  %v1034 = vadd.f32 %v970, %v1002
  %v1035 = vadd.f32 %v971, %v1003
  %v1036 = vadd.f32 %v972, %v1004
  %v1037 = vadd.f32 %v973, %v1005
  %v1038 = vadd.f32 %v974, %v1006
  %v1039 = vadd.f32 %v975, %v1007
  %v1040 = vadd.f32 %v976, %v1008
  %v1041 = vadd.f32 %v977, %v1009
  %v1042 = vadd.f32 %v978, %v1010
  %v1043 = vadd.f32 %v979, %v1011
  %v1044 = vadd.f32 %v980, %v1012
  %v1045 = vadd.f32 %v981, %v1013
  %v1046 = vmul.f32 %v760, %v270
  %v1047 = vmul.f32 %v764, %v270
  %v1048 = vmul.f32 %v768, %v270
  %v1049 = vmul.f32 %v772, %v270
  %v1050 = vmul.f32 %v776, %v270
  %v1051 = vmul.f32 %v780, %v270
  %v1052 = vmul.f32 %v784, %v270
  %v1053 = vmul.f32 %v788, %v270
  %v1054 = vmul.f32 %v792, %v270
  %v1055 = vmul.f32 %v796, %v270
  %v1056 = vmul.f32 %v800, %v270
  %v1057 = vmul.f32 %v804, %v270
  %v1058 = vmul.f32 %v808, %v270
  %v1059 = vmul.f32 %v812, %v270
  %v1060 = vmul.f32 %v816, %v270
  %v1061 = vmul.f32 %v820, %v270
  %v1062 = vmul.f32 %v824, %v270
  %v1063 = vmul.f32 %v828, %v270
  %v1064 = vmul.f32 %v832, %v270
  %v1065 = vmul.f32 %v836, %v270
  %v1066 = vmul.f32 %v840, %v270
  %v1067 = vmul.f32 %v844, %v270
  %v1068 = vmul.f32 %v848, %v270
  %v1069 = vmul.f32 %v852, %v270
  %v1070 = vmul.f32 %v856, %v270
  %v1071 = vmul.f32 %v860, %v270
  %v1072 = vmul.f32 %v864, %v270
  %v1073 = vmul.f32 %v868, %v270
  %v1074 = vmul.f32 %v872, %v270
  %v1075 = vmul.f32 %v876, %v270
  %v1076 = vmul.f32 %v880, %v270
  %v1077 = vmul.f32 %v884, %v270
  %v1078 = vadd.f32 %v1014, %v1046
  %v1079 = vadd.f32 %v1015, %v1047
  %v1080 = vadd.f32 %v1016, %v1048
  %v1081 = vadd.f32 %v1017, %v1049
  %v1082 = vadd.f32 %v1018, %v1050
  %v1083 = vadd.f32 %v1019, %v1051
  %v1084 = vadd.f32 %v1020, %v1052
  %v1085 = vadd.f32 %v1021, %v1053
  %v1086 = vadd.f32 %v1022, %v1054
  %v1087 = vadd.f32 %v1023, %v1055
  %v1088 = vadd.f32 %v1024, %v1056
  %v1089 = vadd.f32 %v1025, %v1057
  %v1090 = vadd.f32 %v1026, %v1058
  %v1091 = vadd.f32 %v1027, %v1059
  %v1092 = vadd.f32 %v1028, %v1060
  %v1093 = vadd.f32 %v1029, %v1061
  %v1094 = vadd.f32 %v1030, %v1062
  %v1095 = vadd.f32 %v1031, %v1063
  %v1096 = vadd.f32 %v1032, %v1064
  %v1097 = vadd.f32 %v1033, %v1065
  %v1098 = vadd.f32 %v1034, %v1066
  %v1099 = vadd.f32 %v1035, %v1067
  %v1100 = vadd.f32 %v1036, %v1068
  %v1101 = vadd.f32 %v1037, %v1069
  %v1102 = vadd.f32 %v1038, %v1070
  %v1103 = vadd.f32 %v1039, %v1071
  %v1104 = vadd.f32 %v1040, %v1072
  %v1105 = vadd.f32 %v1041, %v1073
  %v1106 = vadd.f32 %v1042, %v1074
  %v1107 = vadd.f32 %v1043, %v1075
  %v1108 = vadd.f32 %v1044, %v1076
  %v1109 = vadd.f32 %v1045, %v1077
  %vm1110 = vcmask 1043456
  %v1111 = vsel %vm1110, %v1078, -inf
  %v1112 = vrot.slane %v1111, 4
  %v1113 = vmax.f32 %v1111, %v1112
  %v1114 = vrot.slane %v1113, 2
  %v1115 = vmax.f32 %v1113, %v1114
  %v1116 = vrot.slane %v1115, 1
  %v1117 = vmax.f32 %v1115, %v1116
  %v1118 = vsel %vm1110, %v1079, -inf
  %v1119 = vrot.slane %v1118, 4
  %v1120 = vmax.f32 %v1118, %v1119
  %v1121 = vrot.slane %v1120, 2
  %v1122 = vmax.f32 %v1120, %v1121
  %v1123 = vrot.slane %v1122, 1
  %v1124 = vmax.f32 %v1122, %v1123
  %v1125 = vsel %vm1110, %v1080, -inf
  %v1126 = vrot.slane %v1125, 4
  %v1127 = vmax.f32 %v1125, %v1126
  %v1128 = vrot.slane %v1127, 2
  %v1129 = vmax.f32 %v1127, %v1128
  %v1130 = vrot.slane %v1129, 1
  %v1131 = vmax.f32 %v1129, %v1130
  %v1132 = vsel %vm1110, %v1081, -inf
  %v1133 = vrot.slane %v1132, 4
  %v1134 = vmax.f32 %v1132, %v1133
  %v1135 = vrot.slane %v1134, 2
  %v1136 = vmax.f32 %v1134, %v1135
  %v1137 = vrot.slane %v1136, 1
  %v1138 = vmax.f32 %v1136, %v1137
  %v1139 = vsel %vm1110, %v1082, -inf
  %v1140 = vrot.slane %v1139, 4
  %v1141 = vmax.f32 %v1139, %v1140
  %v1142 = vrot.slane %v1141, 2
  %v1143 = vmax.f32 %v1141, %v1142
  %v1144 = vrot.slane %v1143, 1
  %v1145 = vmax.f32 %v1143, %v1144
  %v1146 = vsel %vm1110, %v1083, -inf
  %v1147 = vrot.slane %v1146, 4
  %v1148 = vmax.f32 %v1146, %v1147
  %v1149 = vrot.slane %v1148, 2
  %v1150 = vmax.f32 %v1148, %v1149
  %v1151 = vrot.slane %v1150, 1
  %v1152 = vmax.f32 %v1150, %v1151
  %v1153 = vsel %vm1110, %v1084, -inf
  %v1154 = vrot.slane %v1153, 4
  %v1155 = vmax.f32 %v1153, %v1154
  %v1156 = vrot.slane %v1155, 2
  %v1157 = vmax.f32 %v1155, %v1156
  %v1158 = vrot.slane %v1157, 1
  %v1159 = vmax.f32 %v1157, %v1158
  %v1160 = vsel %vm1110, %v1085, -inf
  %v1161 = vrot.slane %v1160, 4
  %v1162 = vmax.f32 %v1160, %v1161
  %v1163 = vrot.slane %v1162, 2
  %v1164 = vmax.f32 %v1162, %v1163
  %v1165 = vrot.slane %v1164, 1
  %v1166 = vmax.f32 %v1164, %v1165
  %v1167 = vsel %vm1110, %v1086, -inf
  %v1168 = vrot.slane %v1167, 4
  %v1169 = vmax.f32 %v1167, %v1168
  %v1170 = vrot.slane %v1169, 2
  %v1171 = vmax.f32 %v1169, %v1170
  %v1172 = vrot.slane %v1171, 1
  %v1173 = vmax.f32 %v1171, %v1172
  %v1174 = vsel %vm1110, %v1087, -inf
  %v1175 = vrot.slane %v1174, 4
  %v1176 = vmax.f32 %v1174, %v1175
  %v1177 = vrot.slane %v1176, 2
  %v1178 = vmax.f32 %v1176, %v1177
  %v1179 = vrot.slane %v1178, 1
  %v1180 = vmax.f32 %v1178, %v1179
  %v1181 = vsel %vm1110, %v1088, -inf
  %v1182 = vrot.slane %v1181, 4
  %v1183 = vmax.f32 %v1181, %v1182
  %v1184 = vrot.slane %v1183, 2
  %v1185 = vmax.f32 %v1183, %v1184
  %v1186 = vrot.slane %v1185, 1
  %v1187 = vmax.f32 %v1185, %v1186
  %v1188 = vsel %vm1110, %v1089, -inf
  %v1189 = vrot.slane %v1188, 4
  %v1190 = vmax.f32 %v1188, %v1189
  %v1191 = vrot.slane %v1190, 2
  %v1192 = vmax.f32 %v1190, %v1191
  %v1193 = vrot.slane %v1192, 1
  %v1194 = vmax.f32 %v1192, %v1193
  %v1195 = vsel %vm1110, %v1090, -inf
  %v1196 = vrot.slane %v1195, 4
  %v1197 = vmax.f32 %v1195, %v1196
  %v1198 = vrot.slane %v1197, 2
  %v1199 = vmax.f32 %v1197, %v1198
  %v1200 = vrot.slane %v1199, 1
  %v1201 = vmax.f32 %v1199, %v1200
  %v1202 = vsel %vm1110, %v1091, -inf
  %v1203 = vrot.slane %v1202, 4
  %v1204 = vmax.f32 %v1202, %v1203
  %v1205 = vrot.slane %v1204, 2
  %v1206 = vmax.f32 %v1204, %v1205
  %v1207 = vrot.slane %v1206, 1
  %v1208 = vmax.f32 %v1206, %v1207
  %v1209 = vsel %vm1110, %v1092, -inf
  %v1210 = vrot.slane %v1209, 4
  %v1211 = vmax.f32 %v1209, %v1210
  %v1212 = vrot.slane %v1211, 2
  %v1213 = vmax.f32 %v1211, %v1212
  %v1214 = vrot.slane %v1213, 1
  %v1215 = vmax.f32 %v1213, %v1214
  %v1216 = vsel %vm1110, %v1093, -inf
  %v1217 = vrot.slane %v1216, 4
  %v1218 = vmax.f32 %v1216, %v1217
  %v1219 = vrot.slane %v1218, 2
  %v1220 = vmax.f32 %v1218, %v1219
  %v1221 = vrot.slane %v1220, 1
  %v1222 = vmax.f32 %v1220, %v1221
  %v1223 = vsel %vm1110, %v1094, -inf
  %v1224 = vrot.slane %v1223, 4
  %v1225 = vmax.f32 %v1223, %v1224
  %v1226 = vrot.slane %v1225, 2
  %v1227 = vmax.f32 %v1225, %v1226
  %v1228 = vrot.slane %v1227, 1
  %v1229 = vmax.f32 %v1227, %v1228
  %v1230 = vsel %vm1110, %v1095, -inf
  %v1231 = vrot.slane %v1230, 4
  %v1232 = vmax.f32 %v1230, %v1231
  %v1233 = vrot.slane %v1232, 2
  %v1234 = vmax.f32 %v1232, %v1233
  %v1235 = vrot.slane %v1234, 1
  %v1236 = vmax.f32 %v1234, %v1235
  %v1237 = vsel %vm1110, %v1096, -inf
  %v1238 = vrot.slane %v1237, 4
  %v1239 = vmax.f32 %v1237, %v1238
  %v1240 = vrot.slane %v1239, 2
  %v1241 = vmax.f32 %v1239, %v1240
  %v1242 = vrot.slane %v1241, 1
  %v1243 = vmax.f32 %v1241, %v1242
  %v1244 = vsel %vm1110, %v1097, -inf
  %v1245 = vrot.slane %v1244, 4
  %v1246 = vmax.f32 %v1244, %v1245
  %v1247 = vrot.slane %v1246, 2
  %v1248 = vmax.f32 %v1246, %v1247
  %v1249 = vrot.slane %v1248, 1
  %v1250 = vmax.f32 %v1248, %v1249
  %v1251 = vsel %vm1110, %v1098, -inf
  %v1252 = vrot.slane %v1251, 4
  %v1253 = vmax.f32 %v1251, %v1252
  %v1254 = vrot.slane %v1253, 2
  %v1255 = vmax.f32 %v1253, %v1254
  %v1256 = vrot.slane %v1255, 1
  %v1257 = vmax.f32 %v1255, %v1256
  %v1258 = vsel %vm1110, %v1099, -inf
  %v1259 = vrot.slane %v1258, 4
  %v1260 = vmax.f32 %v1258, %v1259
  %v1261 = vrot.slane %v1260, 2
  %v1262 = vmax.f32 %v1260, %v1261
  %v1263 = vrot.slane %v1262, 1
  %v1264 = vmax.f32 %v1262, %v1263
  %v1265 = vsel %vm1110, %v1100, -inf
  %v1266 = vrot.slane %v1265, 4
  %v1267 = vmax.f32 %v1265, %v1266
  %v1268 = vrot.slane %v1267, 2
  %v1269 = vmax.f32 %v1267, %v1268
  %v1270 = vrot.slane %v1269, 1
  %v1271 = vmax.f32 %v1269, %v1270
  %v1272 = vsel %vm1110, %v1101, -inf
  %v1273 = vrot.slane %v1272, 4
  %v1274 = vmax.f32 %v1272, %v1273
  %v1275 = vrot.slane %v1274, 2
  %v1276 = vmax.f32 %v1274, %v1275
  %v1277 = vrot.slane %v1276, 1
  %v1278 = vmax.f32 %v1276, %v1277
  %v1279 = vsel %vm1110, %v1102, -inf
  %v1280 = vrot.slane %v1279, 4
  %v1281 = vmax.f32 %v1279, %v1280
  %v1282 = vrot.slane %v1281, 2
  %v1283 = vmax.f32 %v1281, %v1282
  %v1284 = vrot.slane %v1283, 1
  %v1285 = vmax.f32 %v1283, %v1284
  %v1286 = vsel %vm1110, %v1103, -inf
  %v1287 = vrot.slane %v1286, 4
  %v1288 = vmax.f32 %v1286, %v1287
  %v1289 = vrot.slane %v1288, 2
  %v1290 = vmax.f32 %v1288, %v1289
  %v1291 = vrot.slane %v1290, 1
  %v1292 = vmax.f32 %v1290, %v1291
  %v1293 = vsel %vm1110, %v1104, -inf
  %v1294 = vrot.slane %v1293, 4
  %v1295 = vmax.f32 %v1293, %v1294
  %v1296 = vrot.slane %v1295, 2
  %v1297 = vmax.f32 %v1295, %v1296
  %v1298 = vrot.slane %v1297, 1
  %v1299 = vmax.f32 %v1297, %v1298
  %v1300 = vsel %vm1110, %v1105, -inf
  %v1301 = vrot.slane %v1300, 4
  %v1302 = vmax.f32 %v1300, %v1301
  %v1303 = vrot.slane %v1302, 2
  %v1304 = vmax.f32 %v1302, %v1303
  %v1305 = vrot.slane %v1304, 1
  %v1306 = vmax.f32 %v1304, %v1305
  %v1307 = vsel %vm1110, %v1106, -inf
  %v1308 = vrot.slane %v1307, 4
  %v1309 = vmax.f32 %v1307, %v1308
  %v1310 = vrot.slane %v1309, 2
  %v1311 = vmax.f32 %v1309, %v1310
  %v1312 = vrot.slane %v1311, 1
  %v1313 = vmax.f32 %v1311, %v1312
  %v1314 = vsel %vm1110, %v1107, -inf
  %v1315 = vrot.slane %v1314, 4
  %v1316 = vmax.f32 %v1314, %v1315
  %v1317 = vrot.slane %v1316, 2
  %v1318 = vmax.f32 %v1316, %v1317
  %v1319 = vrot.slane %v1318, 1
  %v1320 = vmax.f32 %v1318, %v1319
  %v1321 = vsel %vm1110, %v1108, -inf
  %v1322 = vrot.slane %v1321, 4
  %v1323 = vmax.f32 %v1321, %v1322
  %v1324 = vrot.slane %v1323, 2
  %v1325 = vmax.f32 %v1323, %v1324
  %v1326 = vrot.slane %v1325, 1
  %v1327 = vmax.f32 %v1325, %v1326
  %v1328 = vsel %vm1110, %v1109, -inf
  %v1329 = vrot.slane %v1328, 4
  %v1330 = vmax.f32 %v1328, %v1329
  %v1331 = vrot.slane %v1330, 2
  %v1332 = vmax.f32 %v1330, %v1331
  %v1333 = vrot.slane %v1332, 1
  %v1334 = vmax.f32 %v1332, %v1333
  %v1335 = vrot.slane %v283, 1
  %v1336 = vrot.slane %v283, 2
  %v1337 = vrot.slane %v283, 3
  %v1338 = vrot.slane %v283, 4
  %v1339 = vrot.slane %v283, 5
  %v1340 = vrot.slane %v283, 6
  %v1341 = vrot.slane %v283, 7
  %v1342 = vrot.slane %v287, 1
  %v1343 = vrot.slane %v287, 2
  %v1344 = vrot.slane %v287, 3
  %v1345 = vrot.slane %v287, 4
  %v1346 = vrot.slane %v287, 5
  %v1347 = vrot.slane %v287, 6
  %v1348 = vrot.slane %v287, 7
  %v1349 = vrot.slane %v291, 1
  %v1350 = vrot.slane %v291, 2
  %v1351 = vrot.slane %v291, 3
  %v1352 = vrot.slane %v291, 4
  %v1353 = vrot.slane %v291, 5
  %v1354 = vrot.slane %v291, 6
  %v1355 = vrot.slane %v291, 7
  %v1356 = vrot.slane %v295, 1
  %v1357 = vrot.slane %v295, 2
  %v1358 = vrot.slane %v295, 3
  %v1359 = vrot.slane %v295, 4
  %v1360 = vrot.slane %v295, 5
  %v1361 = vrot.slane %v295, 6
  %v1362 = vrot.slane %v295, 7
  %v1395 = vadd.f32 %v1117, %v283
  %v1396 = vadd.f32 %v1124, %v1335
  %v1397 = vadd.f32 %v1131, %v1336
  %v1398 = vadd.f32 %v1138, %v1337
  %v1399 = vadd.f32 %v1145, %v1338
  %v1400 = vadd.f32 %v1152, %v1339
  %v1401 = vadd.f32 %v1159, %v1340
  %v1402 = vadd.f32 %v1166, %v1341
  %v1403 = vadd.f32 %v1173, %v287
  %v1404 = vadd.f32 %v1180, %v1342
  %v1405 = vadd.f32 %v1187, %v1343
  %v1406 = vadd.f32 %v1194, %v1344
  %v1407 = vadd.f32 %v1201, %v1345
  %v1408 = vadd.f32 %v1208, %v1346
  %v1409 = vadd.f32 %v1215, %v1347
  %v1410 = vadd.f32 %v1222, %v1348
  %v1411 = vadd.f32 %v1229, %v291
  %v1412 = vadd.f32 %v1236, %v1349
  %v1413 = vadd.f32 %v1243, %v1350
  %v1414 = vadd.f32 %v1250, %v1351
  %v1415 = vadd.f32 %v1257, %v1352
  %v1416 = vadd.f32 %v1264, %v1353
  %v1417 = vadd.f32 %v1271, %v1354
  %v1418 = vadd.f32 %v1278, %v1355
  %v1419 = vadd.f32 %v1285, %v295
  %v1420 = vadd.f32 %v1292, %v1356
  %v1421 = vadd.f32 %v1299, %v1357
  %v1422 = vadd.f32 %v1306, %v1358
  %v1423 = vadd.f32 %v1313, %v1359
  %v1424 = vadd.f32 %v1320, %v1360
  %v1425 = vadd.f32 %v1327, %v1361
  %v1426 = vadd.f32 %v1334, %v1362
  %v1427 = vmax.f32 %v1395, 0.0
  %v1428 = vmax.f32 %v1396, 0.0
  %v1429 = vmax.f32 %v1397, 0.0
  %v1430 = vmax.f32 %v1398, 0.0
  %v1431 = vmax.f32 %v1399, 0.0
  %v1432 = vmax.f32 %v1400, 0.0
  %v1433 = vmax.f32 %v1401, 0.0
  %v1434 = vmax.f32 %v1402, 0.0
  %v1435 = vmax.f32 %v1403, 0.0
  %v1436 = vmax.f32 %v1404, 0.0
  %v1437 = vmax.f32 %v1405, 0.0
  %v1438 = vmax.f32 %v1406, 0.0
  %v1439 = vmax.f32 %v1407, 0.0
  %v1440 = vmax.f32 %v1408, 0.0
  %v1441 = vmax.f32 %v1409, 0.0
  %v1442 = vmax.f32 %v1410, 0.0
  %v1443 = vmax.f32 %v1411, 0.0
  %v1444 = vmax.f32 %v1412, 0.0
  %v1445 = vmax.f32 %v1413, 0.0
  %v1446 = vmax.f32 %v1414, 0.0
  %v1447 = vmax.f32 %v1415, 0.0
  %v1448 = vmax.f32 %v1416, 0.0
  %v1449 = vmax.f32 %v1417, 0.0
  %v1450 = vmax.f32 %v1418, 0.0
  %v1451 = vmax.f32 %v1419, 0.0
  %v1452 = vmax.f32 %v1420, 0.0
  %v1453 = vmax.f32 %v1421, 0.0
  %v1454 = vmax.f32 %v1422, 0.0
  %v1455 = vmax.f32 %v1423, 0.0
  %v1456 = vmax.f32 %v1424, 0.0
  %v1457 = vmax.f32 %v1425, 0.0
  %v1458 = vmax.f32 %v1426, 0.0
  %v1491 = vrot.slane %v1428, 7
  %vm1492 = vcmask 1041409
  %v1493 = vsel %vm1492, %v1491, %v1427
  %v1494 = vrot.slane %v1429, 6
  %vm1495 = vcmask 1042434
  %v1496 = vsel %vm1495, %v1494, %v1493
  %v1497 = vrot.slane %v1430, 5
  %vm1498 = vcmask 1043459
  %v1499 = vsel %vm1498, %v1497, %v1496
  %v1500 = vrot.slane %v1431, 4
  %vm1501 = vcmask 1044484
  %v1502 = vsel %vm1501, %v1500, %v1499
  %v1503 = vrot.slane %v1432, 3
  %vm1504 = vcmask 1045509
  %v1505 = vsel %vm1504, %v1503, %v1502
  %v1506 = vrot.slane %v1433, 2
  %vm1507 = vcmask 1046534
  %v1508 = vsel %vm1507, %v1506, %v1505
  %v1509 = vrot.slane %v1434, 1
  %vm1510 = vcmask 1047559
  %v1511 = vsel %vm1510, %v1509, %v1508
  %v1512 = vrot.slane %v1436, 7
  %v1513 = vsel %vm1492, %v1512, %v1435
  %v1514 = vrot.slane %v1437, 6
  %v1515 = vsel %vm1495, %v1514, %v1513
  %v1516 = vrot.slane %v1438, 5
  %v1517 = vsel %vm1498, %v1516, %v1515
  %v1518 = vrot.slane %v1439, 4
  %v1519 = vsel %vm1501, %v1518, %v1517
  %v1520 = vrot.slane %v1440, 3
  %v1521 = vsel %vm1504, %v1520, %v1519
  %v1522 = vrot.slane %v1441, 2
  %v1523 = vsel %vm1507, %v1522, %v1521
  %v1524 = vrot.slane %v1442, 1
  %v1525 = vsel %vm1510, %v1524, %v1523
  %v1526 = vrot.slane %v1444, 7
  %v1527 = vsel %vm1492, %v1526, %v1443
  %v1528 = vrot.slane %v1445, 6
  %v1529 = vsel %vm1495, %v1528, %v1527
  %v1530 = vrot.slane %v1446, 5
  %v1531 = vsel %vm1498, %v1530, %v1529
  %v1532 = vrot.slane %v1447, 4
  %v1533 = vsel %vm1501, %v1532, %v1531
  %v1534 = vrot.slane %v1448, 3
  %v1535 = vsel %vm1504, %v1534, %v1533
  %v1536 = vrot.slane %v1449, 2
  %v1537 = vsel %vm1507, %v1536, %v1535
  %v1538 = vrot.slane %v1450, 1
  %v1539 = vsel %vm1510, %v1538, %v1537
  %v1540 = vrot.slane %v1452, 7
  %v1541 = vsel %vm1492, %v1540, %v1451
  %v1542 = vrot.slane %v1453, 6
  %v1543 = vsel %vm1495, %v1542, %v1541
  %v1544 = vrot.slane %v1454, 5
  %v1545 = vsel %vm1498, %v1544, %v1543
  %v1546 = vrot.slane %v1455, 4
  %v1547 = vsel %vm1501, %v1546, %v1545
  %v1548 = vrot.slane %v1456, 3
  %v1549 = vsel %vm1504, %v1548, %v1547
  %v1550 = vrot.slane %v1457, 2
  %v1551 = vsel %vm1507, %v1550, %v1549
  %v1552 = vrot.slane %v1458, 1
  %v1553 = vsel %vm1510, %v1552, %v1551
  %vm1558 = vcmask 261120
  %v1560 = vsel %vm1558, %v308, 0
  %v1563 = vsel %vm1558, %v309, 0
  %1565 = vmatpush.msra.mxu0 0.0
  %1566 = vmatpush.msra.mxu0 0.0
  %1567 = vmatpush.msra.mxu0 0.0
  %1568 = vmatpush.msra.mxu0 0.0
  %1569 = vmatpush.msra.mxu0 0.0
  %1570 = vmatpush.msra.mxu0 0.0
  %1571 = vmatpush.msra.mxu0 0.0
  %1572 = vmatpush.msra.mxu0 0.0
  %1573 = vmatpush.msra.mxu0 0.0
  %1574 = vmatpush.msra.mxu0 0.0
  %1575 = vmatpush.msra.mxu0 0.0
  %1576 = vmatpush.msra.mxu0 0.0
  %1577 = vmatpush.msra.mxu0 %v1553
  %1578 = vmatpush.msra.mxu0 %v1539
  %1579 = vmatpush.msra.mxu0 %v1525
  %1580 = vmatpush.msra.mxu0 %v1511
  %1581 = vmatmul.f32.gmra.mxu0 %v1560
  %v1582 = vpop.f32.mrf.mxu0
  %v1583 = vadd.f32 0.0, %v1582
  %1584 = vmatmul.f32.gmra.mxu0 %v1563
  %v1585 = vpop.f32.mrf.mxu0
  %v1586 = vadd.f32 0.0, %v1585
  %1587 = vdwg.mxu0
  %v1588 = vadd.f32 %v301, %v1583
  %v1589 = vadd.f32 %v306, %v1586
  %vm1590 = vcmask 1047556
  %v1591 = vsel %vm1590, %v1078, -inf
  %v1592 = vrot.slane %v1591, 4
  %v1593 = vmax.f32 %v1591, %v1592
  %v1594 = vrot.slane %v1593, 2
  %v1595 = vmax.f32 %v1593, %v1594
  %v1596 = vrot.slane %v1595, 1
  %v1597 = vmax.f32 %v1595, %v1596
  %v1598 = vsel %vm1590, %v1079, -inf
  %v1599 = vrot.slane %v1598, 4
  %v1600 = vmax.f32 %v1598, %v1599
  %v1601 = vrot.slane %v1600, 2
  %v1602 = vmax.f32 %v1600, %v1601
  %v1603 = vrot.slane %v1602, 1
  %v1604 = vmax.f32 %v1602, %v1603
  %v1605 = vsel %vm1590, %v1080, -inf
  %v1606 = vrot.slane %v1605, 4
  %v1607 = vmax.f32 %v1605, %v1606
  %v1608 = vrot.slane %v1607, 2
  %v1609 = vmax.f32 %v1607, %v1608
  %v1610 = vrot.slane %v1609, 1
  %v1611 = vmax.f32 %v1609, %v1610
  %v1612 = vsel %vm1590, %v1081, -inf
  %v1613 = vrot.slane %v1612, 4
  %v1614 = vmax.f32 %v1612, %v1613
  %v1615 = vrot.slane %v1614, 2
  %v1616 = vmax.f32 %v1614, %v1615
  %v1617 = vrot.slane %v1616, 1
  %v1618 = vmax.f32 %v1616, %v1617
  %v1619 = vsel %vm1590, %v1082, -inf
  %v1620 = vrot.slane %v1619, 4
  %v1621 = vmax.f32 %v1619, %v1620
  %v1622 = vrot.slane %v1621, 2
  %v1623 = vmax.f32 %v1621, %v1622
  %v1624 = vrot.slane %v1623, 1
  %v1625 = vmax.f32 %v1623, %v1624
  %v1626 = vsel %vm1590, %v1083, -inf
  %v1627 = vrot.slane %v1626, 4
  %v1628 = vmax.f32 %v1626, %v1627
  %v1629 = vrot.slane %v1628, 2
  %v1630 = vmax.f32 %v1628, %v1629
  %v1631 = vrot.slane %v1630, 1
  %v1632 = vmax.f32 %v1630, %v1631
  %v1633 = vsel %vm1590, %v1084, -inf
  %v1634 = vrot.slane %v1633, 4
  %v1635 = vmax.f32 %v1633, %v1634
  %v1636 = vrot.slane %v1635, 2
  %v1637 = vmax.f32 %v1635, %v1636
  %v1638 = vrot.slane %v1637, 1
  %v1639 = vmax.f32 %v1637, %v1638
  %v1640 = vsel %vm1590, %v1085, -inf
  %v1641 = vrot.slane %v1640, 4
  %v1642 = vmax.f32 %v1640, %v1641
  %v1643 = vrot.slane %v1642, 2
  %v1644 = vmax.f32 %v1642, %v1643
  %v1645 = vrot.slane %v1644, 1
  %v1646 = vmax.f32 %v1644, %v1645
  %v1647 = vsel %vm1590, %v1086, -inf
  %v1648 = vrot.slane %v1647, 4
  %v1649 = vmax.f32 %v1647, %v1648
  %v1650 = vrot.slane %v1649, 2
  %v1651 = vmax.f32 %v1649, %v1650
  %v1652 = vrot.slane %v1651, 1
  %v1653 = vmax.f32 %v1651, %v1652
  %v1654 = vsel %vm1590, %v1087, -inf
  %v1655 = vrot.slane %v1654, 4
  %v1656 = vmax.f32 %v1654, %v1655
  %v1657 = vrot.slane %v1656, 2
  %v1658 = vmax.f32 %v1656, %v1657
  %v1659 = vrot.slane %v1658, 1
  %v1660 = vmax.f32 %v1658, %v1659
  %v1661 = vsel %vm1590, %v1088, -inf
  %v1662 = vrot.slane %v1661, 4
  %v1663 = vmax.f32 %v1661, %v1662
  %v1664 = vrot.slane %v1663, 2
  %v1665 = vmax.f32 %v1663, %v1664
  %v1666 = vrot.slane %v1665, 1
  %v1667 = vmax.f32 %v1665, %v1666
  %v1668 = vsel %vm1590, %v1089, -inf
  %v1669 = vrot.slane %v1668, 4
  %v1670 = vmax.f32 %v1668, %v1669
  %v1671 = vrot.slane %v1670, 2
  %v1672 = vmax.f32 %v1670, %v1671
  %v1673 = vrot.slane %v1672, 1
  %v1674 = vmax.f32 %v1672, %v1673
  %v1675 = vsel %vm1590, %v1090, -inf
  %v1676 = vrot.slane %v1675, 4
  %v1677 = vmax.f32 %v1675, %v1676
  %v1678 = vrot.slane %v1677, 2
  %v1679 = vmax.f32 %v1677, %v1678
  %v1680 = vrot.slane %v1679, 1
  %v1681 = vmax.f32 %v1679, %v1680
  %v1682 = vsel %vm1590, %v1091, -inf
  %v1683 = vrot.slane %v1682, 4
  %v1684 = vmax.f32 %v1682, %v1683
  %v1685 = vrot.slane %v1684, 2
  %v1686 = vmax.f32 %v1684, %v1685
  %v1687 = vrot.slane %v1686, 1
  %v1688 = vmax.f32 %v1686, %v1687
  %v1689 = vsel %vm1590, %v1092, -inf
  %v1690 = vrot.slane %v1689, 4
  %v1691 = vmax.f32 %v1689, %v1690
  %v1692 = vrot.slane %v1691, 2
  %v1693 = vmax.f32 %v1691, %v1692
  %v1694 = vrot.slane %v1693, 1
  %v1695 = vmax.f32 %v1693, %v1694
  %v1696 = vsel %vm1590, %v1093, -inf
  %v1697 = vrot.slane %v1696, 4
  %v1698 = vmax.f32 %v1696, %v1697
  %v1699 = vrot.slane %v1698, 2
  %v1700 = vmax.f32 %v1698, %v1699
  %v1701 = vrot.slane %v1700, 1
  %v1702 = vmax.f32 %v1700, %v1701
  %v1703 = vsel %vm1590, %v1094, -inf
  %v1704 = vrot.slane %v1703, 4
  %v1705 = vmax.f32 %v1703, %v1704
  %v1706 = vrot.slane %v1705, 2
  %v1707 = vmax.f32 %v1705, %v1706
  %v1708 = vrot.slane %v1707, 1
  %v1709 = vmax.f32 %v1707, %v1708
  %v1710 = vsel %vm1590, %v1095, -inf
  %v1711 = vrot.slane %v1710, 4
  %v1712 = vmax.f32 %v1710, %v1711
  %v1713 = vrot.slane %v1712, 2
  %v1714 = vmax.f32 %v1712, %v1713
  %v1715 = vrot.slane %v1714, 1
  %v1716 = vmax.f32 %v1714, %v1715
  %v1717 = vsel %vm1590, %v1096, -inf
  %v1718 = vrot.slane %v1717, 4
  %v1719 = vmax.f32 %v1717, %v1718
  %v1720 = vrot.slane %v1719, 2
  %v1721 = vmax.f32 %v1719, %v1720
  %v1722 = vrot.slane %v1721, 1
  %v1723 = vmax.f32 %v1721, %v1722
  %v1724 = vsel %vm1590, %v1097, -inf
  %v1725 = vrot.slane %v1724, 4
  %v1726 = vmax.f32 %v1724, %v1725
  %v1727 = vrot.slane %v1726, 2
  %v1728 = vmax.f32 %v1726, %v1727
  %v1729 = vrot.slane %v1728, 1
  %v1730 = vmax.f32 %v1728, %v1729
  %v1731 = vsel %vm1590, %v1098, -inf
  %v1732 = vrot.slane %v1731, 4
  %v1733 = vmax.f32 %v1731, %v1732
  %v1734 = vrot.slane %v1733, 2
  %v1735 = vmax.f32 %v1733, %v1734
  %v1736 = vrot.slane %v1735, 1
  %v1737 = vmax.f32 %v1735, %v1736
  %v1738 = vsel %vm1590, %v1099, -inf
  %v1739 = vrot.slane %v1738, 4
  %v1740 = vmax.f32 %v1738, %v1739
  %v1741 = vrot.slane %v1740, 2
  %v1742 = vmax.f32 %v1740, %v1741
  %v1743 = vrot.slane %v1742, 1
  %v1744 = vmax.f32 %v1742, %v1743
  %v1745 = vsel %vm1590, %v1100, -inf
  %v1746 = vrot.slane %v1745, 4
  %v1747 = vmax.f32 %v1745, %v1746
  %v1748 = vrot.slane %v1747, 2
  %v1749 = vmax.f32 %v1747, %v1748
  %v1750 = vrot.slane %v1749, 1
  %v1751 = vmax.f32 %v1749, %v1750
  %v1752 = vsel %vm1590, %v1101, -inf
  %v1753 = vrot.slane %v1752, 4
  %v1754 = vmax.f32 %v1752, %v1753
  %v1755 = vrot.slane %v1754, 2
  %v1756 = vmax.f32 %v1754, %v1755
  %v1757 = vrot.slane %v1756, 1
  %v1758 = vmax.f32 %v1756, %v1757
  %v1759 = vsel %vm1590, %v1102, -inf
  %v1760 = vrot.slane %v1759, 4
  %v1761 = vmax.f32 %v1759, %v1760
  %v1762 = vrot.slane %v1761, 2
  %v1763 = vmax.f32 %v1761, %v1762
  %v1764 = vrot.slane %v1763, 1
  %v1765 = vmax.f32 %v1763, %v1764
  %v1766 = vsel %vm1590, %v1103, -inf
  %v1767 = vrot.slane %v1766, 4
  %v1768 = vmax.f32 %v1766, %v1767
  %v1769 = vrot.slane %v1768, 2
  %v1770 = vmax.f32 %v1768, %v1769
  %v1771 = vrot.slane %v1770, 1
  %v1772 = vmax.f32 %v1770, %v1771
  %v1773 = vsel %vm1590, %v1104, -inf
  %v1774 = vrot.slane %v1773, 4
  %v1775 = vmax.f32 %v1773, %v1774
  %v1776 = vrot.slane %v1775, 2
  %v1777 = vmax.f32 %v1775, %v1776
  %v1778 = vrot.slane %v1777, 1
  %v1779 = vmax.f32 %v1777, %v1778
  %v1780 = vsel %vm1590, %v1105, -inf
  %v1781 = vrot.slane %v1780, 4
  %v1782 = vmax.f32 %v1780, %v1781
  %v1783 = vrot.slane %v1782, 2
  %v1784 = vmax.f32 %v1782, %v1783
  %v1785 = vrot.slane %v1784, 1
  %v1786 = vmax.f32 %v1784, %v1785
  %v1787 = vsel %vm1590, %v1106, -inf
  %v1788 = vrot.slane %v1787, 4
  %v1789 = vmax.f32 %v1787, %v1788
  %v1790 = vrot.slane %v1789, 2
  %v1791 = vmax.f32 %v1789, %v1790
  %v1792 = vrot.slane %v1791, 1
  %v1793 = vmax.f32 %v1791, %v1792
  %v1794 = vsel %vm1590, %v1107, -inf
  %v1795 = vrot.slane %v1794, 4
  %v1796 = vmax.f32 %v1794, %v1795
  %v1797 = vrot.slane %v1796, 2
  %v1798 = vmax.f32 %v1796, %v1797
  %v1799 = vrot.slane %v1798, 1
  %v1800 = vmax.f32 %v1798, %v1799
  %v1801 = vsel %vm1590, %v1108, -inf
  %v1802 = vrot.slane %v1801, 4
  %v1803 = vmax.f32 %v1801, %v1802
  %v1804 = vrot.slane %v1803, 2
  %v1805 = vmax.f32 %v1803, %v1804
  %v1806 = vrot.slane %v1805, 1
  %v1807 = vmax.f32 %v1805, %v1806
  %v1808 = vsel %vm1590, %v1109, -inf
  %v1809 = vrot.slane %v1808, 4
  %v1810 = vmax.f32 %v1808, %v1809
  %v1811 = vrot.slane %v1810, 2
  %v1812 = vmax.f32 %v1810, %v1811
  %v1813 = vrot.slane %v1812, 1
  %v1814 = vmax.f32 %v1812, %v1813
  %v1815 = vadd.f32 %v1597, %v283
  %v1816 = vadd.f32 %v1604, %v1335
  %v1817 = vadd.f32 %v1611, %v1336
  %v1818 = vadd.f32 %v1618, %v1337
  %v1819 = vadd.f32 %v1625, %v1338
  %v1820 = vadd.f32 %v1632, %v1339
  %v1821 = vadd.f32 %v1639, %v1340
  %v1822 = vadd.f32 %v1646, %v1341
  %v1823 = vadd.f32 %v1653, %v287
  %v1824 = vadd.f32 %v1660, %v1342
  %v1825 = vadd.f32 %v1667, %v1343
  %v1826 = vadd.f32 %v1674, %v1344
  %v1827 = vadd.f32 %v1681, %v1345
  %v1828 = vadd.f32 %v1688, %v1346
  %v1829 = vadd.f32 %v1695, %v1347
  %v1830 = vadd.f32 %v1702, %v1348
  %v1831 = vadd.f32 %v1709, %v291
  %v1832 = vadd.f32 %v1716, %v1349
  %v1833 = vadd.f32 %v1723, %v1350
  %v1834 = vadd.f32 %v1730, %v1351
  %v1835 = vadd.f32 %v1737, %v1352
  %v1836 = vadd.f32 %v1744, %v1353
  %v1837 = vadd.f32 %v1751, %v1354
  %v1838 = vadd.f32 %v1758, %v1355
  %v1839 = vadd.f32 %v1765, %v295
  %v1840 = vadd.f32 %v1772, %v1356
  %v1841 = vadd.f32 %v1779, %v1357
  %v1842 = vadd.f32 %v1786, %v1358
  %v1843 = vadd.f32 %v1793, %v1359
  %v1844 = vadd.f32 %v1800, %v1360
  %v1845 = vadd.f32 %v1807, %v1361
  %v1846 = vadd.f32 %v1814, %v1362
  %v1847 = vmax.f32 %v1815, 0.0
  %v1848 = vmax.f32 %v1816, 0.0
  %v1849 = vmax.f32 %v1817, 0.0
  %v1850 = vmax.f32 %v1818, 0.0
  %v1851 = vmax.f32 %v1819, 0.0
  %v1852 = vmax.f32 %v1820, 0.0
  %v1853 = vmax.f32 %v1821, 0.0
  %v1854 = vmax.f32 %v1822, 0.0
  %v1855 = vmax.f32 %v1823, 0.0
  %v1856 = vmax.f32 %v1824, 0.0
  %v1857 = vmax.f32 %v1825, 0.0
  %v1858 = vmax.f32 %v1826, 0.0
  %v1859 = vmax.f32 %v1827, 0.0
  %v1860 = vmax.f32 %v1828, 0.0
  %v1861 = vmax.f32 %v1829, 0.0
  %v1862 = vmax.f32 %v1830, 0.0
  %v1863 = vmax.f32 %v1831, 0.0
  %v1864 = vmax.f32 %v1832, 0.0
  %v1865 = vmax.f32 %v1833, 0.0
  %v1866 = vmax.f32 %v1834, 0.0
  %v1867 = vmax.f32 %v1835, 0.0
  %v1868 = vmax.f32 %v1836, 0.0
  %v1869 = vmax.f32 %v1837, 0.0
  %v1870 = vmax.f32 %v1838, 0.0
  %v1871 = vmax.f32 %v1839, 0.0
  %v1872 = vmax.f32 %v1840, 0.0
  %v1873 = vmax.f32 %v1841, 0.0
  %v1874 = vmax.f32 %v1842, 0.0
  %v1875 = vmax.f32 %v1843, 0.0
  %v1876 = vmax.f32 %v1844, 0.0
  %v1877 = vmax.f32 %v1845, 0.0
  %v1878 = vmax.f32 %v1846, 0.0
  %1879 = vrot.lane.b32.xlu0 %v308, 96
  %v1880 = vpop.permute.xlu0 %1879
  %1881 = vrot.lane.b32.xlu0 %v309, 96
  %v1882 = vpop.permute.xlu0 %1881
  %v1915 = vrot.slane %v1848, 7
  %v1916 = vsel %vm1492, %v1915, %v1847
  %v1917 = vrot.slane %v1849, 6
  %v1918 = vsel %vm1495, %v1917, %v1916
  %v1919 = vrot.slane %v1850, 5
  %v1920 = vsel %vm1498, %v1919, %v1918
  %v1921 = vrot.slane %v1851, 4
  %v1922 = vsel %vm1501, %v1921, %v1920
  %v1923 = vrot.slane %v1852, 3
  %v1924 = vsel %vm1504, %v1923, %v1922
  %v1925 = vrot.slane %v1853, 2
  %v1926 = vsel %vm1507, %v1925, %v1924
  %v1927 = vrot.slane %v1854, 1
  %v1928 = vsel %vm1510, %v1927, %v1926
  %v1929 = vrot.slane %v1856, 7
  %v1930 = vsel %vm1492, %v1929, %v1855
  %v1931 = vrot.slane %v1857, 6
  %v1932 = vsel %vm1495, %v1931, %v1930
  %v1933 = vrot.slane %v1858, 5
  %v1934 = vsel %vm1498, %v1933, %v1932
  %v1935 = vrot.slane %v1859, 4
  %v1936 = vsel %vm1501, %v1935, %v1934
  %v1937 = vrot.slane %v1860, 3
  %v1938 = vsel %vm1504, %v1937, %v1936
  %v1939 = vrot.slane %v1861, 2
  %v1940 = vsel %vm1507, %v1939, %v1938
  %v1941 = vrot.slane %v1862, 1
  %v1942 = vsel %vm1510, %v1941, %v1940
  %v1943 = vrot.slane %v1864, 7
  %v1944 = vsel %vm1492, %v1943, %v1863
  %v1945 = vrot.slane %v1865, 6
  %v1946 = vsel %vm1495, %v1945, %v1944
  %v1947 = vrot.slane %v1866, 5
  %v1948 = vsel %vm1498, %v1947, %v1946
  %v1949 = vrot.slane %v1867, 4
  %v1950 = vsel %vm1501, %v1949, %v1948
  %v1951 = vrot.slane %v1868, 3
  %v1952 = vsel %vm1504, %v1951, %v1950
  %v1953 = vrot.slane %v1869, 2
  %v1954 = vsel %vm1507, %v1953, %v1952
  %v1955 = vrot.slane %v1870, 1
  %v1956 = vsel %vm1510, %v1955, %v1954
  %v1957 = vrot.slane %v1872, 7
  %v1958 = vsel %vm1492, %v1957, %v1871
  %v1959 = vrot.slane %v1873, 6
  %v1960 = vsel %vm1495, %v1959, %v1958
  %v1961 = vrot.slane %v1874, 5
  %v1962 = vsel %vm1498, %v1961, %v1960
  %v1963 = vrot.slane %v1875, 4
  %v1964 = vsel %vm1501, %v1963, %v1962
  %v1965 = vrot.slane %v1876, 3
  %v1966 = vsel %vm1504, %v1965, %v1964
  %v1967 = vrot.slane %v1877, 2
  %v1968 = vsel %vm1507, %v1967, %v1966
  %v1969 = vrot.slane %v1878, 1
  %v1970 = vsel %vm1510, %v1969, %v1968
  %v1975 = vsel %vm1558, %v1880, 0
  %v1977 = vsel %vm1558, %v1882, 0
  %1979 = vmatpush.msra.mxu0 0.0
  %1980 = vmatpush.msra.mxu0 0.0
  %1981 = vmatpush.msra.mxu0 0.0
  %1982 = vmatpush.msra.mxu0 0.0
  %1983 = vmatpush.msra.mxu0 0.0
  %1984 = vmatpush.msra.mxu0 0.0
  %1985 = vmatpush.msra.mxu0 0.0
  %1986 = vmatpush.msra.mxu0 0.0
  %1987 = vmatpush.msra.mxu0 0.0
  %1988 = vmatpush.msra.mxu0 0.0
  %1989 = vmatpush.msra.mxu0 0.0
  %1990 = vmatpush.msra.mxu0 0.0
  %1991 = vmatpush.msra.mxu0 %v1970
  %1992 = vmatpush.msra.mxu0 %v1956
  %1993 = vmatpush.msra.mxu0 %v1942
  %1994 = vmatpush.msra.mxu0 %v1928
  %1995 = vmatmul.f32.gmra.mxu0 %v1975
  %v1996 = vpop.f32.mrf.mxu0
  %v1997 = vadd.f32 0.0, %v1996
  %1998 = vmatmul.f32.gmra.mxu0 %v1977
  %v1999 = vpop.f32.mrf.mxu0
  %v2000 = vadd.f32 0.0, %v1999
  %2001 = vdwg.mxu0
  %v2002 = vadd.f32 %v1588, %v1997
  %v2003 = vadd.f32 %v1589, %v2000
  %v2004 = vmul.f32 %v376, %v40
  %v2005 = vmul.f32 %v380, %v40
  %v2006 = vmul.f32 %v384, %v40
  %v2007 = vmul.f32 %v388, %v40
  %v2008 = vmul.f32 %v392, %v40
  %v2009 = vmul.f32 %v396, %v40
  %v2010 = vmul.f32 %v400, %v40
  %v2011 = vmul.f32 %v404, %v40
  %v2012 = vmul.f32 %v408, %v40
  %v2013 = vmul.f32 %v412, %v40
  %v2014 = vmul.f32 %v416, %v40
  %v2015 = vmul.f32 %v420, %v40
  %v2016 = vmul.f32 %v424, %v40
  %v2017 = vmul.f32 %v428, %v40
  %v2018 = vmul.f32 %v432, %v40
  %v2019 = vmul.f32 %v436, %v40
  %v2020 = vmul.f32 %v440, %v40
  %v2021 = vmul.f32 %v444, %v40
  %v2022 = vmul.f32 %v448, %v40
  %v2023 = vmul.f32 %v452, %v40
  %v2024 = vmul.f32 %v456, %v40
  %v2025 = vmul.f32 %v460, %v40
  %v2026 = vmul.f32 %v464, %v40
  %v2027 = vmul.f32 %v468, %v40
  %v2028 = vmul.f32 %v472, %v40
  %v2029 = vmul.f32 %v476, %v40
  %v2030 = vmul.f32 %v480, %v40
  %v2031 = vmul.f32 %v484, %v40
  %v2032 = vmul.f32 %v488, %v40
  %v2033 = vmul.f32 %v492, %v40
  %v2034 = vmul.f32 %v496, %v40
  %v2035 = vmul.f32 %v500, %v40
  %v2036 = vmul.f32 %v504, %v76
  %v2037 = vmul.f32 %v508, %v76
  %v2038 = vmul.f32 %v512, %v76
  %v2039 = vmul.f32 %v516, %v76
  %v2040 = vmul.f32 %v520, %v76
  %v2041 = vmul.f32 %v524, %v76
  %v2042 = vmul.f32 %v528, %v76
  %v2043 = vmul.f32 %v532, %v76
  %v2044 = vmul.f32 %v536, %v76
  %v2045 = vmul.f32 %v540, %v76
  %v2046 = vmul.f32 %v544, %v76
  %v2047 = vmul.f32 %v548, %v76
  %v2048 = vmul.f32 %v552, %v76
  %v2049 = vmul.f32 %v556, %v76
  %v2050 = vmul.f32 %v560, %v76
  %v2051 = vmul.f32 %v564, %v76
  %v2052 = vmul.f32 %v568, %v76
  %v2053 = vmul.f32 %v572, %v76
  %v2054 = vmul.f32 %v576, %v76
  %v2055 = vmul.f32 %v580, %v76
  %v2056 = vmul.f32 %v584, %v76
  %v2057 = vmul.f32 %v588, %v76
  %v2058 = vmul.f32 %v592, %v76
  %v2059 = vmul.f32 %v596, %v76
  %v2060 = vmul.f32 %v600, %v76
  %v2061 = vmul.f32 %v604, %v76
  %v2062 = vmul.f32 %v608, %v76
  %v2063 = vmul.f32 %v612, %v76
  %v2064 = vmul.f32 %v616, %v76
  %v2065 = vmul.f32 %v620, %v76
  %v2066 = vmul.f32 %v624, %v76
  %v2067 = vmul.f32 %v628, %v76
  %v2068 = vadd.f32 %v2004, %v2036
  %v2069 = vadd.f32 %v2005, %v2037
  %v2070 = vadd.f32 %v2006, %v2038
  %v2071 = vadd.f32 %v2007, %v2039
  %v2072 = vadd.f32 %v2008, %v2040
  %v2073 = vadd.f32 %v2009, %v2041
  %v2074 = vadd.f32 %v2010, %v2042
  %v2075 = vadd.f32 %v2011, %v2043
  %v2076 = vadd.f32 %v2012, %v2044
  %v2077 = vadd.f32 %v2013, %v2045
  %v2078 = vadd.f32 %v2014, %v2046
  %v2079 = vadd.f32 %v2015, %v2047
  %v2080 = vadd.f32 %v2016, %v2048
  %v2081 = vadd.f32 %v2017, %v2049
  %v2082 = vadd.f32 %v2018, %v2050
  %v2083 = vadd.f32 %v2019, %v2051
  %v2084 = vadd.f32 %v2020, %v2052
  %v2085 = vadd.f32 %v2021, %v2053
  %v2086 = vadd.f32 %v2022, %v2054
  %v2087 = vadd.f32 %v2023, %v2055
  %v2088 = vadd.f32 %v2024, %v2056
  %v2089 = vadd.f32 %v2025, %v2057
  %v2090 = vadd.f32 %v2026, %v2058
  %v2091 = vadd.f32 %v2027, %v2059
  %v2092 = vadd.f32 %v2028, %v2060
  %v2093 = vadd.f32 %v2029, %v2061
  %v2094 = vadd.f32 %v2030, %v2062
  %v2095 = vadd.f32 %v2031, %v2063
  %v2096 = vadd.f32 %v2032, %v2064
  %v2097 = vadd.f32 %v2033, %v2065
  %v2098 = vadd.f32 %v2034, %v2066
  %v2099 = vadd.f32 %v2035, %v2067
  %v2100 = vmul.f32 %v632, %v202
  %v2101 = vmul.f32 %v636, %v202
  %v2102 = vmul.f32 %v640, %v202
  %v2103 = vmul.f32 %v644, %v202
  %v2104 = vmul.f32 %v648, %v202
  %v2105 = vmul.f32 %v652, %v202
  %v2106 = vmul.f32 %v656, %v202
  %v2107 = vmul.f32 %v660, %v202
  %v2108 = vmul.f32 %v664, %v202
  %v2109 = vmul.f32 %v668, %v202
  %v2110 = vmul.f32 %v672, %v202
  %v2111 = vmul.f32 %v676, %v202
  %v2112 = vmul.f32 %v680, %v202
  %v2113 = vmul.f32 %v684, %v202
  %v2114 = vmul.f32 %v688, %v202
  %v2115 = vmul.f32 %v692, %v202
  %v2116 = vmul.f32 %v696, %v202
  %v2117 = vmul.f32 %v700, %v202
  %v2118 = vmul.f32 %v704, %v202
  %v2119 = vmul.f32 %v708, %v202
  %v2120 = vmul.f32 %v712, %v202
  %v2121 = vmul.f32 %v716, %v202
  %v2122 = vmul.f32 %v720, %v202
  %v2123 = vmul.f32 %v724, %v202
  %v2124 = vmul.f32 %v728, %v202
  %v2125 = vmul.f32 %v732, %v202
  %v2126 = vmul.f32 %v736, %v202
  %v2127 = vmul.f32 %v740, %v202
  %v2128 = vmul.f32 %v744, %v202
  %v2129 = vmul.f32 %v748, %v202
  %v2130 = vmul.f32 %v752, %v202
  %v2131 = vmul.f32 %v756, %v202
  %v2132 = vadd.f32 %v2068, %v2100
  %v2133 = vadd.f32 %v2069, %v2101
  %v2134 = vadd.f32 %v2070, %v2102
  %v2135 = vadd.f32 %v2071, %v2103
  %v2136 = vadd.f32 %v2072, %v2104
  %v2137 = vadd.f32 %v2073, %v2105
  %v2138 = vadd.f32 %v2074, %v2106
  %v2139 = vadd.f32 %v2075, %v2107
  %v2140 = vadd.f32 %v2076, %v2108
  %v2141 = vadd.f32 %v2077, %v2109
  %v2142 = vadd.f32 %v2078, %v2110
  %v2143 = vadd.f32 %v2079, %v2111
  %v2144 = vadd.f32 %v2080, %v2112
  %v2145 = vadd.f32 %v2081, %v2113
  %v2146 = vadd.f32 %v2082, %v2114
  %v2147 = vadd.f32 %v2083, %v2115
  %v2148 = vadd.f32 %v2084, %v2116
  %v2149 = vadd.f32 %v2085, %v2117
  %v2150 = vadd.f32 %v2086, %v2118
  %v2151 = vadd.f32 %v2087, %v2119
  %v2152 = vadd.f32 %v2088, %v2120
  %v2153 = vadd.f32 %v2089, %v2121
  %v2154 = vadd.f32 %v2090, %v2122
  %v2155 = vadd.f32 %v2091, %v2123
  %v2156 = vadd.f32 %v2092, %v2124
  %v2157 = vadd.f32 %v2093, %v2125
  %v2158 = vadd.f32 %v2094, %v2126
  %v2159 = vadd.f32 %v2095, %v2127
  %v2160 = vadd.f32 %v2096, %v2128
  %v2161 = vadd.f32 %v2097, %v2129
  %v2162 = vadd.f32 %v2098, %v2130
  %v2163 = vadd.f32 %v2099, %v2131
  %v2164 = vmul.f32 %v760, %v271
  %v2165 = vmul.f32 %v764, %v271
  %v2166 = vmul.f32 %v768, %v271
  %v2167 = vmul.f32 %v772, %v271
  %v2168 = vmul.f32 %v776, %v271
  %v2169 = vmul.f32 %v780, %v271
  %v2170 = vmul.f32 %v784, %v271
  %v2171 = vmul.f32 %v788, %v271
  %v2172 = vmul.f32 %v792, %v271
  %v2173 = vmul.f32 %v796, %v271
  %v2174 = vmul.f32 %v800, %v271
  %v2175 = vmul.f32 %v804, %v271
  %v2176 = vmul.f32 %v808, %v271
  %v2177 = vmul.f32 %v812, %v271
  %v2178 = vmul.f32 %v816, %v271
  %v2179 = vmul.f32 %v820, %v271
  %v2180 = vmul.f32 %v824, %v271
  %v2181 = vmul.f32 %v828, %v271
  %v2182 = vmul.f32 %v832, %v271
  %v2183 = vmul.f32 %v836, %v271
  %v2184 = vmul.f32 %v840, %v271
  %v2185 = vmul.f32 %v844, %v271
  %v2186 = vmul.f32 %v848, %v271
  %v2187 = vmul.f32 %v852, %v271
  %v2188 = vmul.f32 %v856, %v271
  %v2189 = vmul.f32 %v860, %v271
  %v2190 = vmul.f32 %v864, %v271
  %v2191 = vmul.f32 %v868, %v271
  %v2192 = vmul.f32 %v872, %v271
  %v2193 = vmul.f32 %v876, %v271
  %v2194 = vmul.f32 %v880, %v271
  %v2195 = vmul.f32 %v884, %v271
  %v2196 = vadd.f32 %v2132, %v2164
  %v2197 = vadd.f32 %v2133, %v2165
  %v2198 = vadd.f32 %v2134, %v2166
  %v2199 = vadd.f32 %v2135, %v2167
  %v2200 = vadd.f32 %v2136, %v2168
  %v2201 = vadd.f32 %v2137, %v2169
  %v2202 = vadd.f32 %v2138, %v2170
  %v2203 = vadd.f32 %v2139, %v2171
  %v2204 = vadd.f32 %v2140, %v2172
  %v2205 = vadd.f32 %v2141, %v2173
  %v2206 = vadd.f32 %v2142, %v2174
  %v2207 = vadd.f32 %v2143, %v2175
  %v2208 = vadd.f32 %v2144, %v2176
  %v2209 = vadd.f32 %v2145, %v2177
  %v2210 = vadd.f32 %v2146, %v2178
  %v2211 = vadd.f32 %v2147, %v2179
  %v2212 = vadd.f32 %v2148, %v2180
  %v2213 = vadd.f32 %v2149, %v2181
  %v2214 = vadd.f32 %v2150, %v2182
  %v2215 = vadd.f32 %v2151, %v2183
  %v2216 = vadd.f32 %v2152, %v2184
  %v2217 = vadd.f32 %v2153, %v2185
  %v2218 = vadd.f32 %v2154, %v2186
  %v2219 = vadd.f32 %v2155, %v2187
  %v2220 = vadd.f32 %v2156, %v2188
  %v2221 = vadd.f32 %v2157, %v2189
  %v2222 = vadd.f32 %v2158, %v2190
  %v2223 = vadd.f32 %v2159, %v2191
  %v2224 = vadd.f32 %v2160, %v2192
  %v2225 = vadd.f32 %v2161, %v2193
  %v2226 = vadd.f32 %v2162, %v2194
  %v2227 = vadd.f32 %v2163, %v2195
  %v2228 = vsel %vm1110, %v2196, -inf
  %v2229 = vrot.slane %v2228, 4
  %v2230 = vmax.f32 %v2228, %v2229
  %v2231 = vrot.slane %v2230, 2
  %v2232 = vmax.f32 %v2230, %v2231
  %v2233 = vrot.slane %v2232, 1
  %v2234 = vmax.f32 %v2232, %v2233
  %v2235 = vsel %vm1110, %v2197, -inf
  %v2236 = vrot.slane %v2235, 4
  %v2237 = vmax.f32 %v2235, %v2236
  %v2238 = vrot.slane %v2237, 2
  %v2239 = vmax.f32 %v2237, %v2238
  %v2240 = vrot.slane %v2239, 1
  %v2241 = vmax.f32 %v2239, %v2240
  %v2242 = vsel %vm1110, %v2198, -inf
  %v2243 = vrot.slane %v2242, 4
  %v2244 = vmax.f32 %v2242, %v2243
  %v2245 = vrot.slane %v2244, 2
  %v2246 = vmax.f32 %v2244, %v2245
  %v2247 = vrot.slane %v2246, 1
  %v2248 = vmax.f32 %v2246, %v2247
  %v2249 = vsel %vm1110, %v2199, -inf
  %v2250 = vrot.slane %v2249, 4
  %v2251 = vmax.f32 %v2249, %v2250
  %v2252 = vrot.slane %v2251, 2
  %v2253 = vmax.f32 %v2251, %v2252
  %v2254 = vrot.slane %v2253, 1
  %v2255 = vmax.f32 %v2253, %v2254
  %v2256 = vsel %vm1110, %v2200, -inf
  %v2257 = vrot.slane %v2256, 4
  %v2258 = vmax.f32 %v2256, %v2257
  %v2259 = vrot.slane %v2258, 2
  %v2260 = vmax.f32 %v2258, %v2259
  %v2261 = vrot.slane %v2260, 1
  %v2262 = vmax.f32 %v2260, %v2261
  %v2263 = vsel %vm1110, %v2201, -inf
  %v2264 = vrot.slane %v2263, 4
  %v2265 = vmax.f32 %v2263, %v2264
  %v2266 = vrot.slane %v2265, 2
  %v2267 = vmax.f32 %v2265, %v2266
  %v2268 = vrot.slane %v2267, 1
  %v2269 = vmax.f32 %v2267, %v2268
  %v2270 = vsel %vm1110, %v2202, -inf
  %v2271 = vrot.slane %v2270, 4
  %v2272 = vmax.f32 %v2270, %v2271
  %v2273 = vrot.slane %v2272, 2
  %v2274 = vmax.f32 %v2272, %v2273
  %v2275 = vrot.slane %v2274, 1
  %v2276 = vmax.f32 %v2274, %v2275
  %v2277 = vsel %vm1110, %v2203, -inf
  %v2278 = vrot.slane %v2277, 4
  %v2279 = vmax.f32 %v2277, %v2278
  %v2280 = vrot.slane %v2279, 2
  %v2281 = vmax.f32 %v2279, %v2280
  %v2282 = vrot.slane %v2281, 1
  %v2283 = vmax.f32 %v2281, %v2282
  %v2284 = vsel %vm1110, %v2204, -inf
  %v2285 = vrot.slane %v2284, 4
  %v2286 = vmax.f32 %v2284, %v2285
  %v2287 = vrot.slane %v2286, 2
  %v2288 = vmax.f32 %v2286, %v2287
  %v2289 = vrot.slane %v2288, 1
  %v2290 = vmax.f32 %v2288, %v2289
  %v2291 = vsel %vm1110, %v2205, -inf
  %v2292 = vrot.slane %v2291, 4
  %v2293 = vmax.f32 %v2291, %v2292
  %v2294 = vrot.slane %v2293, 2
  %v2295 = vmax.f32 %v2293, %v2294
  %v2296 = vrot.slane %v2295, 1
  %v2297 = vmax.f32 %v2295, %v2296
  %v2298 = vsel %vm1110, %v2206, -inf
  %v2299 = vrot.slane %v2298, 4
  %v2300 = vmax.f32 %v2298, %v2299
  %v2301 = vrot.slane %v2300, 2
  %v2302 = vmax.f32 %v2300, %v2301
  %v2303 = vrot.slane %v2302, 1
  %v2304 = vmax.f32 %v2302, %v2303
  %v2305 = vsel %vm1110, %v2207, -inf
  %v2306 = vrot.slane %v2305, 4
  %v2307 = vmax.f32 %v2305, %v2306
  %v2308 = vrot.slane %v2307, 2
  %v2309 = vmax.f32 %v2307, %v2308
  %v2310 = vrot.slane %v2309, 1
  %v2311 = vmax.f32 %v2309, %v2310
  %v2312 = vsel %vm1110, %v2208, -inf
  %v2313 = vrot.slane %v2312, 4
  %v2314 = vmax.f32 %v2312, %v2313
  %v2315 = vrot.slane %v2314, 2
  %v2316 = vmax.f32 %v2314, %v2315
  %v2317 = vrot.slane %v2316, 1
  %v2318 = vmax.f32 %v2316, %v2317
  %v2319 = vsel %vm1110, %v2209, -inf
  %v2320 = vrot.slane %v2319, 4
  %v2321 = vmax.f32 %v2319, %v2320
  %v2322 = vrot.slane %v2321, 2
  %v2323 = vmax.f32 %v2321, %v2322
  %v2324 = vrot.slane %v2323, 1
  %v2325 = vmax.f32 %v2323, %v2324
  %v2326 = vsel %vm1110, %v2210, -inf
  %v2327 = vrot.slane %v2326, 4
  %v2328 = vmax.f32 %v2326, %v2327
  %v2329 = vrot.slane %v2328, 2
  %v2330 = vmax.f32 %v2328, %v2329
  %v2331 = vrot.slane %v2330, 1
  %v2332 = vmax.f32 %v2330, %v2331
  %v2333 = vsel %vm1110, %v2211, -inf
  %v2334 = vrot.slane %v2333, 4
  %v2335 = vmax.f32 %v2333, %v2334
  %v2336 = vrot.slane %v2335, 2
  %v2337 = vmax.f32 %v2335, %v2336
  %v2338 = vrot.slane %v2337, 1
  %v2339 = vmax.f32 %v2337, %v2338
  %v2340 = vsel %vm1110, %v2212, -inf
  %v2341 = vrot.slane %v2340, 4
  %v2342 = vmax.f32 %v2340, %v2341
  %v2343 = vrot.slane %v2342, 2
  %v2344 = vmax.f32 %v2342, %v2343
  %v2345 = vrot.slane %v2344, 1
  %v2346 = vmax.f32 %v2344, %v2345
  %v2347 = vsel %vm1110, %v2213, -inf
  %v2348 = vrot.slane %v2347, 4
  %v2349 = vmax.f32 %v2347, %v2348
  %v2350 = vrot.slane %v2349, 2
  %v2351 = vmax.f32 %v2349, %v2350
  %v2352 = vrot.slane %v2351, 1
  %v2353 = vmax.f32 %v2351, %v2352
  %v2354 = vsel %vm1110, %v2214, -inf
  %v2355 = vrot.slane %v2354, 4
  %v2356 = vmax.f32 %v2354, %v2355
  %v2357 = vrot.slane %v2356, 2
  %v2358 = vmax.f32 %v2356, %v2357
  %v2359 = vrot.slane %v2358, 1
  %v2360 = vmax.f32 %v2358, %v2359
  %v2361 = vsel %vm1110, %v2215, -inf
  %v2362 = vrot.slane %v2361, 4
  %v2363 = vmax.f32 %v2361, %v2362
  %v2364 = vrot.slane %v2363, 2
  %v2365 = vmax.f32 %v2363, %v2364
  %v2366 = vrot.slane %v2365, 1
  %v2367 = vmax.f32 %v2365, %v2366
  %v2368 = vsel %vm1110, %v2216, -inf
  %v2369 = vrot.slane %v2368, 4
  %v2370 = vmax.f32 %v2368, %v2369
  %v2371 = vrot.slane %v2370, 2
  %v2372 = vmax.f32 %v2370, %v2371
  %v2373 = vrot.slane %v2372, 1
  %v2374 = vmax.f32 %v2372, %v2373
  %v2375 = vsel %vm1110, %v2217, -inf
  %v2376 = vrot.slane %v2375, 4
  %v2377 = vmax.f32 %v2375, %v2376
  %v2378 = vrot.slane %v2377, 2
  %v2379 = vmax.f32 %v2377, %v2378
  %v2380 = vrot.slane %v2379, 1
  %v2381 = vmax.f32 %v2379, %v2380
  %v2382 = vsel %vm1110, %v2218, -inf
  %v2383 = vrot.slane %v2382, 4
  %v2384 = vmax.f32 %v2382, %v2383
  %v2385 = vrot.slane %v2384, 2
  %v2386 = vmax.f32 %v2384, %v2385
  %v2387 = vrot.slane %v2386, 1
  %v2388 = vmax.f32 %v2386, %v2387
  %v2389 = vsel %vm1110, %v2219, -inf
  %v2390 = vrot.slane %v2389, 4
  %v2391 = vmax.f32 %v2389, %v2390
  %v2392 = vrot.slane %v2391, 2
  %v2393 = vmax.f32 %v2391, %v2392
  %v2394 = vrot.slane %v2393, 1
  %v2395 = vmax.f32 %v2393, %v2394
  %v2396 = vsel %vm1110, %v2220, -inf
  %v2397 = vrot.slane %v2396, 4
  %v2398 = vmax.f32 %v2396, %v2397
  %v2399 = vrot.slane %v2398, 2
  %v2400 = vmax.f32 %v2398, %v2399
  %v2401 = vrot.slane %v2400, 1
  %v2402 = vmax.f32 %v2400, %v2401
  %v2403 = vsel %vm1110, %v2221, -inf
  %v2404 = vrot.slane %v2403, 4
  %v2405 = vmax.f32 %v2403, %v2404
  %v2406 = vrot.slane %v2405, 2
  %v2407 = vmax.f32 %v2405, %v2406
  %v2408 = vrot.slane %v2407, 1
  %v2409 = vmax.f32 %v2407, %v2408
  %v2410 = vsel %vm1110, %v2222, -inf
  %v2411 = vrot.slane %v2410, 4
  %v2412 = vmax.f32 %v2410, %v2411
  %v2413 = vrot.slane %v2412, 2
  %v2414 = vmax.f32 %v2412, %v2413
  %v2415 = vrot.slane %v2414, 1
  %v2416 = vmax.f32 %v2414, %v2415
  %v2417 = vsel %vm1110, %v2223, -inf
  %v2418 = vrot.slane %v2417, 4
  %v2419 = vmax.f32 %v2417, %v2418
  %v2420 = vrot.slane %v2419, 2
  %v2421 = vmax.f32 %v2419, %v2420
  %v2422 = vrot.slane %v2421, 1
  %v2423 = vmax.f32 %v2421, %v2422
  %v2424 = vsel %vm1110, %v2224, -inf
  %v2425 = vrot.slane %v2424, 4
  %v2426 = vmax.f32 %v2424, %v2425
  %v2427 = vrot.slane %v2426, 2
  %v2428 = vmax.f32 %v2426, %v2427
  %v2429 = vrot.slane %v2428, 1
  %v2430 = vmax.f32 %v2428, %v2429
  %v2431 = vsel %vm1110, %v2225, -inf
  %v2432 = vrot.slane %v2431, 4
  %v2433 = vmax.f32 %v2431, %v2432
  %v2434 = vrot.slane %v2433, 2
  %v2435 = vmax.f32 %v2433, %v2434
  %v2436 = vrot.slane %v2435, 1
  %v2437 = vmax.f32 %v2435, %v2436
  %v2438 = vsel %vm1110, %v2226, -inf
  %v2439 = vrot.slane %v2438, 4
  %v2440 = vmax.f32 %v2438, %v2439
  %v2441 = vrot.slane %v2440, 2
  %v2442 = vmax.f32 %v2440, %v2441
  %v2443 = vrot.slane %v2442, 1
  %v2444 = vmax.f32 %v2442, %v2443
  %v2445 = vsel %vm1110, %v2227, -inf
  %v2446 = vrot.slane %v2445, 4
  %v2447 = vmax.f32 %v2445, %v2446
  %v2448 = vrot.slane %v2447, 2
  %v2449 = vmax.f32 %v2447, %v2448
  %v2450 = vrot.slane %v2449, 1
  %v2451 = vmax.f32 %v2449, %v2450
  %v2452 = vadd.f32 %v2234, %v283
  %v2453 = vadd.f32 %v2241, %v1335
  %v2454 = vadd.f32 %v2248, %v1336
  %v2455 = vadd.f32 %v2255, %v1337
  %v2456 = vadd.f32 %v2262, %v1338
  %v2457 = vadd.f32 %v2269, %v1339
  %v2458 = vadd.f32 %v2276, %v1340
  %v2459 = vadd.f32 %v2283, %v1341
  %v2460 = vadd.f32 %v2290, %v287
  %v2461 = vadd.f32 %v2297, %v1342
  %v2462 = vadd.f32 %v2304, %v1343
  %v2463 = vadd.f32 %v2311, %v1344
  %v2464 = vadd.f32 %v2318, %v1345
  %v2465 = vadd.f32 %v2325, %v1346
  %v2466 = vadd.f32 %v2332, %v1347
  %v2467 = vadd.f32 %v2339, %v1348
  %v2468 = vadd.f32 %v2346, %v291
  %v2469 = vadd.f32 %v2353, %v1349
  %v2470 = vadd.f32 %v2360, %v1350
  %v2471 = vadd.f32 %v2367, %v1351
  %v2472 = vadd.f32 %v2374, %v1352
  %v2473 = vadd.f32 %v2381, %v1353
  %v2474 = vadd.f32 %v2388, %v1354
  %v2475 = vadd.f32 %v2395, %v1355
  %v2476 = vadd.f32 %v2402, %v295
  %v2477 = vadd.f32 %v2409, %v1356
  %v2478 = vadd.f32 %v2416, %v1357
  %v2479 = vadd.f32 %v2423, %v1358
  %v2480 = vadd.f32 %v2430, %v1359
  %v2481 = vadd.f32 %v2437, %v1360
  %v2482 = vadd.f32 %v2444, %v1361
  %v2483 = vadd.f32 %v2451, %v1362
  %v2484 = vmax.f32 %v2452, 0.0
  %v2485 = vmax.f32 %v2453, 0.0
  %v2486 = vmax.f32 %v2454, 0.0
  %v2487 = vmax.f32 %v2455, 0.0
  %v2488 = vmax.f32 %v2456, 0.0
  %v2489 = vmax.f32 %v2457, 0.0
  %v2490 = vmax.f32 %v2458, 0.0
  %v2491 = vmax.f32 %v2459, 0.0
  %v2492 = vmax.f32 %v2460, 0.0
  %v2493 = vmax.f32 %v2461, 0.0
  %v2494 = vmax.f32 %v2462, 0.0
  %v2495 = vmax.f32 %v2463, 0.0
  %v2496 = vmax.f32 %v2464, 0.0
  %v2497 = vmax.f32 %v2465, 0.0
  %v2498 = vmax.f32 %v2466, 0.0
  %v2499 = vmax.f32 %v2467, 0.0
  %v2500 = vmax.f32 %v2468, 0.0
  %v2501 = vmax.f32 %v2469, 0.0
  %v2502 = vmax.f32 %v2470, 0.0
  %v2503 = vmax.f32 %v2471, 0.0
  %v2504 = vmax.f32 %v2472, 0.0
  %v2505 = vmax.f32 %v2473, 0.0
  %v2506 = vmax.f32 %v2474, 0.0
  %v2507 = vmax.f32 %v2475, 0.0
  %v2508 = vmax.f32 %v2476, 0.0
  %v2509 = vmax.f32 %v2477, 0.0
  %v2510 = vmax.f32 %v2478, 0.0
  %v2511 = vmax.f32 %v2479, 0.0
  %v2512 = vmax.f32 %v2480, 0.0
  %v2513 = vmax.f32 %v2481, 0.0
  %v2514 = vmax.f32 %v2482, 0.0
  %v2515 = vmax.f32 %v2483, 0.0
  %2516 = vrot.lane.b32.xlu0 %v308, 64
  %v2517 = vpop.permute.xlu0 %2516
  %2518 = vrot.lane.b32.xlu0 %v309, 64
  %v2519 = vpop.permute.xlu0 %2518
  %v2552 = vrot.slane %v2485, 7
  %v2553 = vsel %vm1492, %v2552, %v2484
  %v2554 = vrot.slane %v2486, 6
  %v2555 = vsel %vm1495, %v2554, %v2553
  %v2556 = vrot.slane %v2487, 5
  %v2557 = vsel %vm1498, %v2556, %v2555
  %v2558 = vrot.slane %v2488, 4
  %v2559 = vsel %vm1501, %v2558, %v2557
  %v2560 = vrot.slane %v2489, 3
  %v2561 = vsel %vm1504, %v2560, %v2559
  %v2562 = vrot.slane %v2490, 2
  %v2563 = vsel %vm1507, %v2562, %v2561
  %v2564 = vrot.slane %v2491, 1
  %v2565 = vsel %vm1510, %v2564, %v2563
  %v2566 = vrot.slane %v2493, 7
  %v2567 = vsel %vm1492, %v2566, %v2492
  %v2568 = vrot.slane %v2494, 6
  %v2569 = vsel %vm1495, %v2568, %v2567
  %v2570 = vrot.slane %v2495, 5
  %v2571 = vsel %vm1498, %v2570, %v2569
  %v2572 = vrot.slane %v2496, 4
  %v2573 = vsel %vm1501, %v2572, %v2571
  %v2574 = vrot.slane %v2497, 3
  %v2575 = vsel %vm1504, %v2574, %v2573
  %v2576 = vrot.slane %v2498, 2
  %v2577 = vsel %vm1507, %v2576, %v2575
  %v2578 = vrot.slane %v2499, 1
  %v2579 = vsel %vm1510, %v2578, %v2577
  %v2580 = vrot.slane %v2501, 7
  %v2581 = vsel %vm1492, %v2580, %v2500
  %v2582 = vrot.slane %v2502, 6
  %v2583 = vsel %vm1495, %v2582, %v2581
  %v2584 = vrot.slane %v2503, 5
  %v2585 = vsel %vm1498, %v2584, %v2583
  %v2586 = vrot.slane %v2504, 4
  %v2587 = vsel %vm1501, %v2586, %v2585
  %v2588 = vrot.slane %v2505, 3
  %v2589 = vsel %vm1504, %v2588, %v2587
  %v2590 = vrot.slane %v2506, 2
  %v2591 = vsel %vm1507, %v2590, %v2589
  %v2592 = vrot.slane %v2507, 1
  %v2593 = vsel %vm1510, %v2592, %v2591
  %v2594 = vrot.slane %v2509, 7
  %v2595 = vsel %vm1492, %v2594, %v2508
  %v2596 = vrot.slane %v2510, 6
  %v2597 = vsel %vm1495, %v2596, %v2595
  %v2598 = vrot.slane %v2511, 5
  %v2599 = vsel %vm1498, %v2598, %v2597
  %v2600 = vrot.slane %v2512, 4
  %v2601 = vsel %vm1501, %v2600, %v2599
  %v2602 = vrot.slane %v2513, 3
  %v2603 = vsel %vm1504, %v2602, %v2601
  %v2604 = vrot.slane %v2514, 2
  %v2605 = vsel %vm1507, %v2604, %v2603
  %v2606 = vrot.slane %v2515, 1
  %v2607 = vsel %vm1510, %v2606, %v2605
  %v2612 = vsel %vm1558, %v2517, 0
  %v2614 = vsel %vm1558, %v2519, 0
  %2616 = vmatpush.msra.mxu0 0.0
  %2617 = vmatpush.msra.mxu0 0.0
  %2618 = vmatpush.msra.mxu0 0.0
  %2619 = vmatpush.msra.mxu0 0.0
  %2620 = vmatpush.msra.mxu0 0.0
  %2621 = vmatpush.msra.mxu0 0.0
  %2622 = vmatpush.msra.mxu0 0.0
  %2623 = vmatpush.msra.mxu0 0.0
  %2624 = vmatpush.msra.mxu0 0.0
  %2625 = vmatpush.msra.mxu0 0.0
  %2626 = vmatpush.msra.mxu0 0.0
  %2627 = vmatpush.msra.mxu0 0.0
  %2628 = vmatpush.msra.mxu0 %v2607
  %2629 = vmatpush.msra.mxu0 %v2593
  %2630 = vmatpush.msra.mxu0 %v2579
  %2631 = vmatpush.msra.mxu0 %v2565
  %2632 = vmatmul.f32.gmra.mxu0 %v2612
  %v2633 = vpop.f32.mrf.mxu0
  %v2634 = vadd.f32 0.0, %v2633
  %2635 = vmatmul.f32.gmra.mxu0 %v2614
  %v2636 = vpop.f32.mrf.mxu0
  %v2637 = vadd.f32 0.0, %v2636
  %2638 = vdwg.mxu0
  %v2639 = vadd.f32 %v2002, %v2634
  %v2640 = vadd.f32 %v2003, %v2637
  %v2641 = vsel %vm1590, %v2196, -inf
  %v2642 = vrot.slane %v2641, 4
  %v2643 = vmax.f32 %v2641, %v2642
  %v2644 = vrot.slane %v2643, 2
  %v2645 = vmax.f32 %v2643, %v2644
  %v2646 = vrot.slane %v2645, 1
  %v2647 = vmax.f32 %v2645, %v2646
  %v2648 = vsel %vm1590, %v2197, -inf
  %v2649 = vrot.slane %v2648, 4
  %v2650 = vmax.f32 %v2648, %v2649
  %v2651 = vrot.slane %v2650, 2
  %v2652 = vmax.f32 %v2650, %v2651
  %v2653 = vrot.slane %v2652, 1
  %v2654 = vmax.f32 %v2652, %v2653
  %v2655 = vsel %vm1590, %v2198, -inf
  %v2656 = vrot.slane %v2655, 4
  %v2657 = vmax.f32 %v2655, %v2656
  %v2658 = vrot.slane %v2657, 2
  %v2659 = vmax.f32 %v2657, %v2658
  %v2660 = vrot.slane %v2659, 1
  %v2661 = vmax.f32 %v2659, %v2660
  %v2662 = vsel %vm1590, %v2199, -inf
  %v2663 = vrot.slane %v2662, 4
  %v2664 = vmax.f32 %v2662, %v2663
  %v2665 = vrot.slane %v2664, 2
  %v2666 = vmax.f32 %v2664, %v2665
  %v2667 = vrot.slane %v2666, 1
  %v2668 = vmax.f32 %v2666, %v2667
  %v2669 = vsel %vm1590, %v2200, -inf
  %v2670 = vrot.slane %v2669, 4
  %v2671 = vmax.f32 %v2669, %v2670
  %v2672 = vrot.slane %v2671, 2
  %v2673 = vmax.f32 %v2671, %v2672
  %v2674 = vrot.slane %v2673, 1
  %v2675 = vmax.f32 %v2673, %v2674
  %v2676 = vsel %vm1590, %v2201, -inf
  %v2677 = vrot.slane %v2676, 4
  %v2678 = vmax.f32 %v2676, %v2677
  %v2679 = vrot.slane %v2678, 2
  %v2680 = vmax.f32 %v2678, %v2679
  %v2681 = vrot.slane %v2680, 1
  %v2682 = vmax.f32 %v2680, %v2681
  %v2683 = vsel %vm1590, %v2202, -inf
  %v2684 = vrot.slane %v2683, 4
  %v2685 = vmax.f32 %v2683, %v2684
  %v2686 = vrot.slane %v2685, 2
  %v2687 = vmax.f32 %v2685, %v2686
  %v2688 = vrot.slane %v2687, 1
  %v2689 = vmax.f32 %v2687, %v2688
  %v2690 = vsel %vm1590, %v2203, -inf
  %v2691 = vrot.slane %v2690, 4
  %v2692 = vmax.f32 %v2690, %v2691
  %v2693 = vrot.slane %v2692, 2
  %v2694 = vmax.f32 %v2692, %v2693
  %v2695 = vrot.slane %v2694, 1
  %v2696 = vmax.f32 %v2694, %v2695
  %v2697 = vsel %vm1590, %v2204, -inf
  %v2698 = vrot.slane %v2697, 4
  %v2699 = vmax.f32 %v2697, %v2698
  %v2700 = vrot.slane %v2699, 2
  %v2701 = vmax.f32 %v2699, %v2700
  %v2702 = vrot.slane %v2701, 1
  %v2703 = vmax.f32 %v2701, %v2702
  %v2704 = vsel %vm1590, %v2205, -inf
  %v2705 = vrot.slane %v2704, 4
  %v2706 = vmax.f32 %v2704, %v2705
  %v2707 = vrot.slane %v2706, 2
  %v2708 = vmax.f32 %v2706, %v2707
  %v2709 = vrot.slane %v2708, 1
  %v2710 = vmax.f32 %v2708, %v2709
  %v2711 = vsel %vm1590, %v2206, -inf
  %v2712 = vrot.slane %v2711, 4
  %v2713 = vmax.f32 %v2711, %v2712
  %v2714 = vrot.slane %v2713, 2
  %v2715 = vmax.f32 %v2713, %v2714
  %v2716 = vrot.slane %v2715, 1
  %v2717 = vmax.f32 %v2715, %v2716
  %v2718 = vsel %vm1590, %v2207, -inf
  %v2719 = vrot.slane %v2718, 4
  %v2720 = vmax.f32 %v2718, %v2719
  %v2721 = vrot.slane %v2720, 2
  %v2722 = vmax.f32 %v2720, %v2721
  %v2723 = vrot.slane %v2722, 1
  %v2724 = vmax.f32 %v2722, %v2723
  %v2725 = vsel %vm1590, %v2208, -inf
  %v2726 = vrot.slane %v2725, 4
  %v2727 = vmax.f32 %v2725, %v2726
  %v2728 = vrot.slane %v2727, 2
  %v2729 = vmax.f32 %v2727, %v2728
  %v2730 = vrot.slane %v2729, 1
  %v2731 = vmax.f32 %v2729, %v2730
  %v2732 = vsel %vm1590, %v2209, -inf
  %v2733 = vrot.slane %v2732, 4
  %v2734 = vmax.f32 %v2732, %v2733
  %v2735 = vrot.slane %v2734, 2
  %v2736 = vmax.f32 %v2734, %v2735
  %v2737 = vrot.slane %v2736, 1
  %v2738 = vmax.f32 %v2736, %v2737
  %v2739 = vsel %vm1590, %v2210, -inf
  %v2740 = vrot.slane %v2739, 4
  %v2741 = vmax.f32 %v2739, %v2740
  %v2742 = vrot.slane %v2741, 2
  %v2743 = vmax.f32 %v2741, %v2742
  %v2744 = vrot.slane %v2743, 1
  %v2745 = vmax.f32 %v2743, %v2744
  %v2746 = vsel %vm1590, %v2211, -inf
  %v2747 = vrot.slane %v2746, 4
  %v2748 = vmax.f32 %v2746, %v2747
  %v2749 = vrot.slane %v2748, 2
  %v2750 = vmax.f32 %v2748, %v2749
  %v2751 = vrot.slane %v2750, 1
  %v2752 = vmax.f32 %v2750, %v2751
  %v2753 = vsel %vm1590, %v2212, -inf
  %v2754 = vrot.slane %v2753, 4
  %v2755 = vmax.f32 %v2753, %v2754
  %v2756 = vrot.slane %v2755, 2
  %v2757 = vmax.f32 %v2755, %v2756
  %v2758 = vrot.slane %v2757, 1
  %v2759 = vmax.f32 %v2757, %v2758
  %v2760 = vsel %vm1590, %v2213, -inf
  %v2761 = vrot.slane %v2760, 4
  %v2762 = vmax.f32 %v2760, %v2761
  %v2763 = vrot.slane %v2762, 2
  %v2764 = vmax.f32 %v2762, %v2763
  %v2765 = vrot.slane %v2764, 1
  %v2766 = vmax.f32 %v2764, %v2765
  %v2767 = vsel %vm1590, %v2214, -inf
  %v2768 = vrot.slane %v2767, 4
  %v2769 = vmax.f32 %v2767, %v2768
  %v2770 = vrot.slane %v2769, 2
  %v2771 = vmax.f32 %v2769, %v2770
  %v2772 = vrot.slane %v2771, 1
  %v2773 = vmax.f32 %v2771, %v2772
  %v2774 = vsel %vm1590, %v2215, -inf
  %v2775 = vrot.slane %v2774, 4
  %v2776 = vmax.f32 %v2774, %v2775
  %v2777 = vrot.slane %v2776, 2
  %v2778 = vmax.f32 %v2776, %v2777
  %v2779 = vrot.slane %v2778, 1
  %v2780 = vmax.f32 %v2778, %v2779
  %v2781 = vsel %vm1590, %v2216, -inf
  %v2782 = vrot.slane %v2781, 4
  %v2783 = vmax.f32 %v2781, %v2782
  %v2784 = vrot.slane %v2783, 2
  %v2785 = vmax.f32 %v2783, %v2784
  %v2786 = vrot.slane %v2785, 1
  %v2787 = vmax.f32 %v2785, %v2786
  %v2788 = vsel %vm1590, %v2217, -inf
  %v2789 = vrot.slane %v2788, 4
  %v2790 = vmax.f32 %v2788, %v2789
  %v2791 = vrot.slane %v2790, 2
  %v2792 = vmax.f32 %v2790, %v2791
  %v2793 = vrot.slane %v2792, 1
  %v2794 = vmax.f32 %v2792, %v2793
  %v2795 = vsel %vm1590, %v2218, -inf
  %v2796 = vrot.slane %v2795, 4
  %v2797 = vmax.f32 %v2795, %v2796
  %v2798 = vrot.slane %v2797, 2
  %v2799 = vmax.f32 %v2797, %v2798
  %v2800 = vrot.slane %v2799, 1
  %v2801 = vmax.f32 %v2799, %v2800
  %v2802 = vsel %vm1590, %v2219, -inf
  %v2803 = vrot.slane %v2802, 4
  %v2804 = vmax.f32 %v2802, %v2803
  %v2805 = vrot.slane %v2804, 2
  %v2806 = vmax.f32 %v2804, %v2805
  %v2807 = vrot.slane %v2806, 1
  %v2808 = vmax.f32 %v2806, %v2807
  %v2809 = vsel %vm1590, %v2220, -inf
  %v2810 = vrot.slane %v2809, 4
  %v2811 = vmax.f32 %v2809, %v2810
  %v2812 = vrot.slane %v2811, 2
  %v2813 = vmax.f32 %v2811, %v2812
  %v2814 = vrot.slane %v2813, 1
  %v2815 = vmax.f32 %v2813, %v2814
  %v2816 = vsel %vm1590, %v2221, -inf
  %v2817 = vrot.slane %v2816, 4
  %v2818 = vmax.f32 %v2816, %v2817
  %v2819 = vrot.slane %v2818, 2
  %v2820 = vmax.f32 %v2818, %v2819
  %v2821 = vrot.slane %v2820, 1
  %v2822 = vmax.f32 %v2820, %v2821
  %v2823 = vsel %vm1590, %v2222, -inf
  %v2824 = vrot.slane %v2823, 4
  %v2825 = vmax.f32 %v2823, %v2824
  %v2826 = vrot.slane %v2825, 2
  %v2827 = vmax.f32 %v2825, %v2826
  %v2828 = vrot.slane %v2827, 1
  %v2829 = vmax.f32 %v2827, %v2828
  %v2830 = vsel %vm1590, %v2223, -inf
  %v2831 = vrot.slane %v2830, 4
  %v2832 = vmax.f32 %v2830, %v2831
  %v2833 = vrot.slane %v2832, 2
  %v2834 = vmax.f32 %v2832, %v2833
  %v2835 = vrot.slane %v2834, 1
  %v2836 = vmax.f32 %v2834, %v2835
  %v2837 = vsel %vm1590, %v2224, -inf
  %v2838 = vrot.slane %v2837, 4
  %v2839 = vmax.f32 %v2837, %v2838
  %v2840 = vrot.slane %v2839, 2
  %v2841 = vmax.f32 %v2839, %v2840
  %v2842 = vrot.slane %v2841, 1
  %v2843 = vmax.f32 %v2841, %v2842
  %v2844 = vsel %vm1590, %v2225, -inf
  %v2845 = vrot.slane %v2844, 4
  %v2846 = vmax.f32 %v2844, %v2845
  %v2847 = vrot.slane %v2846, 2
  %v2848 = vmax.f32 %v2846, %v2847
  %v2849 = vrot.slane %v2848, 1
  %v2850 = vmax.f32 %v2848, %v2849
  %v2851 = vsel %vm1590, %v2226, -inf
  %v2852 = vrot.slane %v2851, 4
  %v2853 = vmax.f32 %v2851, %v2852
  %v2854 = vrot.slane %v2853, 2
  %v2855 = vmax.f32 %v2853, %v2854
  %v2856 = vrot.slane %v2855, 1
  %v2857 = vmax.f32 %v2855, %v2856
  %v2858 = vsel %vm1590, %v2227, -inf
  %v2859 = vrot.slane %v2858, 4
  %v2860 = vmax.f32 %v2858, %v2859
  %v2861 = vrot.slane %v2860, 2
  %v2862 = vmax.f32 %v2860, %v2861
  %v2863 = vrot.slane %v2862, 1
  %v2864 = vmax.f32 %v2862, %v2863
  %v2865 = vadd.f32 %v2647, %v283
  %v2866 = vadd.f32 %v2654, %v1335
  %v2867 = vadd.f32 %v2661, %v1336
  %v2868 = vadd.f32 %v2668, %v1337
  %v2869 = vadd.f32 %v2675, %v1338
  %v2870 = vadd.f32 %v2682, %v1339
  %v2871 = vadd.f32 %v2689, %v1340
  %v2872 = vadd.f32 %v2696, %v1341
  %v2873 = vadd.f32 %v2703, %v287
  %v2874 = vadd.f32 %v2710, %v1342
  %v2875 = vadd.f32 %v2717, %v1343
  %v2876 = vadd.f32 %v2724, %v1344
  %v2877 = vadd.f32 %v2731, %v1345
  %v2878 = vadd.f32 %v2738, %v1346
  %v2879 = vadd.f32 %v2745, %v1347
  %v2880 = vadd.f32 %v2752, %v1348
  %v2881 = vadd.f32 %v2759, %v291
  %v2882 = vadd.f32 %v2766, %v1349
  %v2883 = vadd.f32 %v2773, %v1350
  %v2884 = vadd.f32 %v2780, %v1351
  %v2885 = vadd.f32 %v2787, %v1352
  %v2886 = vadd.f32 %v2794, %v1353
  %v2887 = vadd.f32 %v2801, %v1354
  %v2888 = vadd.f32 %v2808, %v1355
  %v2889 = vadd.f32 %v2815, %v295
  %v2890 = vadd.f32 %v2822, %v1356
  %v2891 = vadd.f32 %v2829, %v1357
  %v2892 = vadd.f32 %v2836, %v1358
  %v2893 = vadd.f32 %v2843, %v1359
  %v2894 = vadd.f32 %v2850, %v1360
  %v2895 = vadd.f32 %v2857, %v1361
  %v2896 = vadd.f32 %v2864, %v1362
  %v2897 = vmax.f32 %v2865, 0.0
  %v2898 = vmax.f32 %v2866, 0.0
  %v2899 = vmax.f32 %v2867, 0.0
  %v2900 = vmax.f32 %v2868, 0.0
  %v2901 = vmax.f32 %v2869, 0.0
  %v2902 = vmax.f32 %v2870, 0.0
  %v2903 = vmax.f32 %v2871, 0.0
  %v2904 = vmax.f32 %v2872, 0.0
  %v2905 = vmax.f32 %v2873, 0.0
  %v2906 = vmax.f32 %v2874, 0.0
  %v2907 = vmax.f32 %v2875, 0.0
  %v2908 = vmax.f32 %v2876, 0.0
  %v2909 = vmax.f32 %v2877, 0.0
  %v2910 = vmax.f32 %v2878, 0.0
  %v2911 = vmax.f32 %v2879, 0.0
  %v2912 = vmax.f32 %v2880, 0.0
  %v2913 = vmax.f32 %v2881, 0.0
  %v2914 = vmax.f32 %v2882, 0.0
  %v2915 = vmax.f32 %v2883, 0.0
  %v2916 = vmax.f32 %v2884, 0.0
  %v2917 = vmax.f32 %v2885, 0.0
  %v2918 = vmax.f32 %v2886, 0.0
  %v2919 = vmax.f32 %v2887, 0.0
  %v2920 = vmax.f32 %v2888, 0.0
  %v2921 = vmax.f32 %v2889, 0.0
  %v2922 = vmax.f32 %v2890, 0.0
  %v2923 = vmax.f32 %v2891, 0.0
  %v2924 = vmax.f32 %v2892, 0.0
  %v2925 = vmax.f32 %v2893, 0.0
  %v2926 = vmax.f32 %v2894, 0.0
  %v2927 = vmax.f32 %v2895, 0.0
  %v2928 = vmax.f32 %v2896, 0.0
  %2929 = vrot.lane.b32.xlu0 %v308, 32
  %v2930 = vpop.permute.xlu0 %2929
  %2931 = vrot.lane.b32.xlu0 %v309, 32
  %v2932 = vpop.permute.xlu0 %2931
  %v2965 = vrot.slane %v2898, 7
  %v2966 = vsel %vm1492, %v2965, %v2897
  %v2967 = vrot.slane %v2899, 6
  %v2968 = vsel %vm1495, %v2967, %v2966
  %v2969 = vrot.slane %v2900, 5
  %v2970 = vsel %vm1498, %v2969, %v2968
  %v2971 = vrot.slane %v2901, 4
  %v2972 = vsel %vm1501, %v2971, %v2970
  %v2973 = vrot.slane %v2902, 3
  %v2974 = vsel %vm1504, %v2973, %v2972
  %v2975 = vrot.slane %v2903, 2
  %v2976 = vsel %vm1507, %v2975, %v2974
  %v2977 = vrot.slane %v2904, 1
  %v2978 = vsel %vm1510, %v2977, %v2976
  %v2979 = vrot.slane %v2906, 7
  %v2980 = vsel %vm1492, %v2979, %v2905
  %v2981 = vrot.slane %v2907, 6
  %v2982 = vsel %vm1495, %v2981, %v2980
  %v2983 = vrot.slane %v2908, 5
  %v2984 = vsel %vm1498, %v2983, %v2982
  %v2985 = vrot.slane %v2909, 4
  %v2986 = vsel %vm1501, %v2985, %v2984
  %v2987 = vrot.slane %v2910, 3
  %v2988 = vsel %vm1504, %v2987, %v2986
  %v2989 = vrot.slane %v2911, 2
  %v2990 = vsel %vm1507, %v2989, %v2988
  %v2991 = vrot.slane %v2912, 1
  %v2992 = vsel %vm1510, %v2991, %v2990
  %v2993 = vrot.slane %v2914, 7
  %v2994 = vsel %vm1492, %v2993, %v2913
  %v2995 = vrot.slane %v2915, 6
  %v2996 = vsel %vm1495, %v2995, %v2994
  %v2997 = vrot.slane %v2916, 5
  %v2998 = vsel %vm1498, %v2997, %v2996
  %v2999 = vrot.slane %v2917, 4
  %v3000 = vsel %vm1501, %v2999, %v2998
  %v3001 = vrot.slane %v2918, 3
  %v3002 = vsel %vm1504, %v3001, %v3000
  %v3003 = vrot.slane %v2919, 2
  %v3004 = vsel %vm1507, %v3003, %v3002
  %v3005 = vrot.slane %v2920, 1
  %v3006 = vsel %vm1510, %v3005, %v3004
  %v3007 = vrot.slane %v2922, 7
  %v3008 = vsel %vm1492, %v3007, %v2921
  %v3009 = vrot.slane %v2923, 6
  %v3010 = vsel %vm1495, %v3009, %v3008
  %v3011 = vrot.slane %v2924, 5
  %v3012 = vsel %vm1498, %v3011, %v3010
  %v3013 = vrot.slane %v2925, 4
  %v3014 = vsel %vm1501, %v3013, %v3012
  %v3015 = vrot.slane %v2926, 3
  %v3016 = vsel %vm1504, %v3015, %v3014
  %v3017 = vrot.slane %v2927, 2
  %v3018 = vsel %vm1507, %v3017, %v3016
  %v3019 = vrot.slane %v2928, 1
  %v3020 = vsel %vm1510, %v3019, %v3018
  %v3025 = vsel %vm1558, %v2930, 0
  %v3027 = vsel %vm1558, %v2932, 0
  %3029 = vmatpush.msra.mxu0 0.0
  %3030 = vmatpush.msra.mxu0 0.0
  %3031 = vmatpush.msra.mxu0 0.0
  %3032 = vmatpush.msra.mxu0 0.0
  %3033 = vmatpush.msra.mxu0 0.0
  %3034 = vmatpush.msra.mxu0 0.0
  %3035 = vmatpush.msra.mxu0 0.0
  %3036 = vmatpush.msra.mxu0 0.0
  %3037 = vmatpush.msra.mxu0 0.0
  %3038 = vmatpush.msra.mxu0 0.0
  %3039 = vmatpush.msra.mxu0 0.0
  %3040 = vmatpush.msra.mxu0 0.0
  %3041 = vmatpush.msra.mxu0 %v3020
  %3042 = vmatpush.msra.mxu0 %v3006
  %3043 = vmatpush.msra.mxu0 %v2992
  %3044 = vmatpush.msra.mxu0 %v2978
  %3045 = vmatmul.f32.gmra.mxu0 %v3025
  %v3046 = vpop.f32.mrf.mxu0
  %v3047 = vadd.f32 0.0, %v3046
  %3048 = vmatmul.f32.gmra.mxu0 %v3027
  %v3049 = vpop.f32.mrf.mxu0
  %v3050 = vadd.f32 0.0, %v3049
  %3051 = vdwg.mxu0
  %v3052 = vadd.f32 %v2639, %v3047
  %v3053 = vadd.f32 %v2640, %v3050
  %3054 = vst [vmem:[%s6] sm:$0xff] %v3052
  %3055 = vst [vmem:[%s6 + $0x8] sm:$0x3] %v3053
  // Predicated region
  $region26: #{chebyshev_cgcnn_forward.1} parent=0 // pred_check
    _
  $region27: #{chebyshev_cgcnn_forward.1} parent=0 // pred_check_branch
    %3057 = sbr.rel (0) target = $region29
  $region28: #{chebyshev_cgcnn_forward.1} parent=0 // pred_region
    _
  $region29: #{chebyshev_cgcnn_forward.1} parent=0 // pred_fallthru
    _
  // Predicated region
  $region30: #{chebyshev_cgcnn_forward.1} parent=0 // pred_check
    _
  $region31: #{chebyshev_cgcnn_forward.1} parent=0 // pred_check_branch
    %3059 = sbr.rel (0) target = $region33
  $region32: #{chebyshev_cgcnn_forward.1} parent=0 // pred_region
    _
  $region33: #{chebyshev_cgcnn_forward.1} parent=0 // pred_fallthru
    _

</llo_original>
